<compile_context>
chip_gen: v7x
topology: tpu7x:2x2x1
jax: 0.10.0
libtpu: 0.0.40
codegen_flags: <defaults>
</compile_context>

<pallas_src>
import functools
import math

import jax
import jax.numpy as jnp
import numpy as np
from jax import lax
from jax.experimental import pallas as pl
from jax.experimental.pallas import tpu as pltpu

EPS = 1e-5


def _gelu(x):
    # tanh-approx GELU.  TODO(synk): PyTorch nn.GELU defaults to exact erf;
    # erf is not a reliable Mosaic transcendental, tanh approx differs <~1e-3.
    c = math.sqrt(2.0 / math.pi)
    return 0.5 * x * (1.0 + jnp.tanh(c * (x + 0.044715 * x * x * x)))


def _layer_norm(x, g, b, eps=EPS):
    mu = jnp.mean(x, axis=-1, keepdims=True)
    var = jnp.mean(jnp.square(x - mu), axis=-1, keepdims=True)
    return (x - mu) * lax.rsqrt(var + eps) * g + b


# ----------------------------- Pallas kernel --------------------------------
def mamba_block_kernel(x_ref, s_ref,
                       a_ref, wb_ref, wc_ref, d_ref,
                       gs_ref, bs_ref, gn_ref, bn_ref,
                       w1_ref, b1_ref, w2_ref, b2_ref,
                       out_ref, ns_ref,
                       seq_scr, h_scr,
                       *, batch, chunk_len):
    # ---- hoisted parameter reads / bf16 casts (once per grid step) ----
    a = a_ref[...]                        # (1, N)  diagonal decay
    d = d_ref[...]                        # (1, H)  skip gain
    gs, bs = gs_ref[...], bs_ref[...]     # SSM-layer LayerNorm
    gn, bn = gn_ref[...], bn_ref[...]     # block LayerNorm
    b1, b2 = b1_ref[...], b2_ref[...]     # FFN biases
    wb = wb_ref[...].astype(jnp.bfloat16)
    wc = wc_ref[...].astype(jnp.bfloat16)
    w1 = w1_ref[...].astype(jnp.bfloat16)
    w2 = w2_ref[...].astype(jnp.bfloat16)

    # Initialize the carried SSM state from the caller-provided state.
    @pl.when(pl.program_id(0) == 0)
    def _init():
        h_scr[...] = s_ref[...].astype(jnp.float32)

    x = x_ref[...].astype(jnp.float32)    # (R, H), R = chunk_len * batch (time-major rows)

    # ---- SSM layer: pre-norm -> input projection -> diagonal recurrence ----
    xn = _layer_norm(x, gs, bs)                                         # (R, H) f32
    seq_scr[...] = jnp.dot(xn.astype(jnp.bfloat16), wb,
                           preferred_element_type=jnp.float32)          # (R, N) f32

    def step(t, h):
        r = pl.multiple_of(t * batch, batch)
        hn = a * h + seq_scr[pl.ds(r, batch), :]      # (batch, N), f32 on VPU
        seq_scr[pl.ds(r, batch), :] = hn              # overwrite bx rows with h rows
        return hn

    # Short fixed trip-count -> unroll so the scheduler can interleave iterations.
    h_last = lax.fori_loop(0, chunk_len, step, h_scr[...],
                           unroll=(chunk_len <= 16))
    h_scr[...] = h_last                               # carry state to next chunk
    ns_ref[...] = h_last.astype(ns_ref.dtype)         # resident output block: last chunk wins

    y = jnp.dot(seq_scr[...].astype(jnp.bfloat16), wc,
                preferred_element_type=jnp.float32) + xn * d            # (R, H)
    ssm_out = x + _gelu(y)

    # ---- MambaBlock body: norm -> FFN -> residual onto ssm_out ----
    nrm = _layer_norm(ssm_out, gn, bn)
    hid = _gelu(jnp.dot(nrm.astype(jnp.bfloat16), w1,
                        preferred_element_type=jnp.float32) + b1)       # (R, F)
    ffn = jnp.dot(hid.astype(jnp.bfloat16), w2,
                  preferred_element_type=jnp.float32) + b2              # (R, H)

    out_ref[...] = (ffn + ssm_out).astype(out_ref.dtype)


# ------------------------------- wrapper -------------------------------------
PARAM_ORDER = ("a", "wb", "wc", "d", "gs", "bs", "gn", "bn",
               "w1", "b1", "w2", "b2")


def mamba_block(x, state, p, *, chunk_len=None):
    B, L, H = x.shape
    N = state.shape[1]
    Lc = chunk_len if chunk_len is not None else min(L, 128)
    assert L % Lc == 0, "seq_len must be divisible by chunk_len"
    n_chunks = L // Lc
    R = Lc * B                                     # rows handled per grid step

    # Time-major row layout: row (t*B + b) = (timestep t, batch b).
    xt = jnp.transpose(x, (1, 0, 2)).reshape(L * B, H)

    params = [p[k] for k in PARAM_ORDER]
    in_specs = ([pl.BlockSpec((R, H), lambda c: (c, 0)),
                 pl.BlockSpec((B, N), lambda c: (0, 0))]
                + [pl.BlockSpec(w.shape, lambda c: (0, 0)) for w in params])
    out_specs = (pl.BlockSpec((R, H), lambda c: (c, 0)),
                 pl.BlockSpec((B, N), lambda c: (0, 0)))
    out_shape = (jax.ShapeDtypeStruct((L * B, H), x.dtype),
                 jax.ShapeDtypeStruct((B, N), x.dtype))

    kernel = functools.partial(mamba_block_kernel, batch=B, chunk_len=Lc)
    yt, new_state = pl.pallas_call(
        kernel,
        out_shape=out_shape,
        grid_spec=pltpu.PrefetchScalarGridSpec(
            num_scalar_prefetch=0,
            grid=(n_chunks,),
            in_specs=in_specs,
            out_specs=out_specs,
            scratch_shapes=[pltpu.VMEM((R, N), jnp.float32),    # bx -> h rows (chunk)
                            pltpu.VMEM((B, N), jnp.float32)]),  # carried SSM state
        compiler_params=pltpu.CompilerParams(
            # The chunk axis carries SSM state across steps -> sequential.
            dimension_semantics=("arbitrary",),
            # Leave headroom for v7x (64 MiB physical VMEM).
            vmem_limit_bytes=48 * 1024 * 1024),
    )(xt, state, *params)

    out = yt.reshape(L, B, H).transpose(1, 0, 2)   # back to (B, L, H)
    return out, new_state


# --------------------------- pure-JAX reference ------------------------------
def mamba_block_ref(x, state, p):
    xn = _layer_norm(x, p["gs"], p["bs"])
    bx = jnp.einsum("blh,hn->bln", xn, p["wb"])                    # (B, L, N)

    def step(h, bxt):
        h = p["a"][0] * h + bxt
        return h, h

    h_last, hs = lax.scan(step, state, jnp.swapaxes(bx, 0, 1))
    hs = jnp.swapaxes(hs, 0, 1)                                    # (B, L, N)
    y = jnp.einsum("bln,nh->blh", hs, p["wc"]) + xn * p["d"]
    ssm_out = x + _gelu(y)
    nrm = _layer_norm(ssm_out, p["gn"], p["bn"])
    hid = _gelu(jnp.einsum("blh,hf->blf", nrm, p["w1"]) + p["b1"])
    ffn = jnp.einsum("blf,fh->blh", hid, p["w2"]) + p["b2"]
    return ffn + ssm_out, h_last


# --------------------------------- main ---------------------------------------
if __name__ == "__main__":
    # Lane/sublane-friendly small shapes:
    #   B = 8  -> each per-timestep row group in the recurrence is sublane-aligned.
    #   H = 128, N = 128 -> all inner-loop slabs and the output store are lane-dense.
    #   Two sequence chunks (L=16, chunk_len=8) exercise the cross-chunk state carry.
    B, L, H, N, F = 8, 16, 128, 128, 256

    key = jax.random.PRNGKey(0)
    kx, ks, k1, k2, k3, k4, k5, k6 = jax.random.split(key, 8)

    params = {
        # diagonal transition (stable decay in (0, 1))
        "a":  jnp.exp(-jnp.linspace(0.5, 2.0, N, dtype=jnp.float32)).reshape(1, N),
        "wb": jax.random.normal(k1, (H, N), jnp.float32) / math.sqrt(H),
        "wc": jax.random.normal(k2, (N, H), jnp.float32) / math.sqrt(N),
        "d":  jax.random.normal(k3, (1, H), jnp.float32) * 0.1,
        # SSM-layer LayerNorm
        "gs": jnp.ones((1, H), jnp.float32),
        "bs": jnp.zeros((1, H), jnp.float32),
        # MambaBlock LayerNorm
        "gn": jnp.ones((1, H), jnp.float32),
        "bn": jnp.zeros((1, H), jnp.float32),
        # FeedForwardNetwork (Linear(H->F), gelu, Linear(F->H))
        "w1": jax.random.normal(k4, (H, F), jnp.float32) / math.sqrt(H),
        "b1": jax.random.normal(k5, (1, F), jnp.float32) * 0.05,
        "w2": jax.random.normal(k6, (F, H), jnp.float32) / math.sqrt(F),
        "b2": jnp.zeros((1, H), jnp.float32),
    }

    x = jax.random.normal(kx, (B, L, H), jnp.float32)
    state = 0.1 * jax.random.normal(ks, (B, N), jnp.float32)   # non-zero: exercises carry

    run = jax.jit(functools.partial(mamba_block, chunk_len=8))
    out, new_state = run(x, state, params)
    out = jax.block_until_ready(out)
    new_state = jax.block_until_ready(new_state)

    out_ref, state_ref = mamba_block_ref(x, state, params)
    # bf16 MXU operands with f32 accumulation vs pure-f32 reference:
    # agreement is at the ~1e-2 level by design (intentional perf trade-off).
    np.testing.assert_allclose(np.asarray(out), np.asarray(out_ref),
                               rtol=5e-2, atol=5e-2)
    np.testing.assert_allclose(np.asarray(new_state), np.asarray(state_ref),
                               rtol=5e-2, atol=5e-2)

    print("KERNEL_OK")
</pallas_src>

<mosaic_0001>
module attributes {stable_mosaic.version = 11 : i64} {
  func.func @mamba_block_kernel(%arg0: i32, %arg1: memref<64x128xf32, #tpu.memory_space<vmem>>, %arg2: memref<8x128xf32, #tpu.memory_space<vmem>>, %arg3: memref<1x128xf32, #tpu.memory_space<vmem>>, %arg4: memref<128x128xf32, #tpu.memory_space<vmem>>, %arg5: memref<128x128xf32, #tpu.memory_space<vmem>>, %arg6: memref<1x128xf32, #tpu.memory_space<vmem>>, %arg7: memref<1x128xf32, #tpu.memory_space<vmem>>, %arg8: memref<1x128xf32, #tpu.memory_space<vmem>>, %arg9: memref<1x128xf32, #tpu.memory_space<vmem>>, %arg10: memref<1x128xf32, #tpu.memory_space<vmem>>, %arg11: memref<128x256xf32, #tpu.memory_space<vmem>>, %arg12: memref<1x256xf32, #tpu.memory_space<vmem>>, %arg13: memref<256x128xf32, #tpu.memory_space<vmem>>, %arg14: memref<1x128xf32, #tpu.memory_space<vmem>>, %arg15: memref<64x128xf32, #tpu.memory_space<vmem>>, %arg16: memref<8x128xf32, #tpu.memory_space<vmem>>, %arg17: memref<64x128xf32, #tpu.memory_space<vmem>>, %arg18: memref<8x128xf32, #tpu.memory_space<vmem>>) attributes {dimension_semantics = [#tpu.dimension_semantics<arbitrary>], iteration_bounds = array<i64: 2>, scalar_prefetch = 0 : i64, scratch_operands = 2 : i64, tpu.core_type = #tpu.core_type<tc>, window_params = [{transform_indices = @transform_0, window_bounds = array<i64: 64, 128>}, {pipeline_mode = #tpu.pipeline_mode<synchronous>, transform_indices = @transform_1, window_bounds = array<i64: 8, 128>}, {pipeline_mode = #tpu.pipeline_mode<synchronous>, transform_indices = @transform_2, window_bounds = array<i64: 1, 128>}, {pipeline_mode = #tpu.pipeline_mode<synchronous>, transform_indices = @transform_3, window_bounds = array<i64: 128, 128>}, {pipeline_mode = #tpu.pipeline_mode<synchronous>, transform_indices = @transform_4, window_bounds = array<i64: 128, 128>}, {pipeline_mode = #tpu.pipeline_mode<synchronous>, transform_indices = @transform_5, window_bounds = array<i64: 1, 128>}, {pipeline_mode = #tpu.pipeline_mode<synchronous>, transform_indices = @transform_6, window_bounds = array<i64: 1, 128>}, {pipeline_mode = #tpu.pipeline_mode<synchronous>, transform_indices = @transform_7, window_bounds = array<i64: 1, 128>}, {pipeline_mode = #tpu.pipeline_mode<synchronous>, transform_indices = @transform_8, window_bounds = array<i64: 1, 128>}, {pipeline_mode = #tpu.pipeline_mode<synchronous>, transform_indices = @transform_9, window_bounds = array<i64: 1, 128>}, {pipeline_mode = #tpu.pipeline_mode<synchronous>, transform_indices = @transform_10, window_bounds = array<i64: 128, 256>}, {pipeline_mode = #tpu.pipeline_mode<synchronous>, transform_indices = @transform_11, window_bounds = array<i64: 1, 256>}, {pipeline_mode = #tpu.pipeline_mode<synchronous>, transform_indices = @transform_12, window_bounds = array<i64: 256, 128>}, {pipeline_mode = #tpu.pipeline_mode<synchronous>, transform_indices = @transform_13, window_bounds = array<i64: 1, 128>}, {transform_indices = @transform_14, window_bounds = array<i64: 64, 128>}, {pipeline_mode = #tpu.pipeline_mode<synchronous>, transform_indices = @transform_15, window_bounds = array<i64: 8, 128>}]} {
    %c0 = arith.constant 0 : index
    %c0_0 = arith.constant 0 : index
    %0 = vector.load %arg3[%c0, %c0_0] : memref<1x128xf32, #tpu.memory_space<vmem>>, vector<1x128xf32>
    %c0_1 = arith.constant 0 : index
    %c0_2 = arith.constant 0 : index
    %1 = vector.load %arg6[%c0_1, %c0_2] : memref<1x128xf32, #tpu.memory_space<vmem>>, vector<1x128xf32>
    %c0_3 = arith.constant 0 : index
    %c0_4 = arith.constant 0 : index
    %2 = vector.load %arg7[%c0_3, %c0_4] : memref<1x128xf32, #tpu.memory_space<vmem>>, vector<1x128xf32>
    %c0_5 = arith.constant 0 : index
    %c0_6 = arith.constant 0 : index
    %3 = vector.load %arg8[%c0_5, %c0_6] : memref<1x128xf32, #tpu.memory_space<vmem>>, vector<1x128xf32>
    %c0_7 = arith.constant 0 : index
    %c0_8 = arith.constant 0 : index
    %4 = vector.load %arg9[%c0_7, %c0_8] : memref<1x128xf32, #tpu.memory_space<vmem>>, vector<1x128xf32>
    %c0_9 = arith.constant 0 : index
    %c0_10 = arith.constant 0 : index
    %5 = vector.load %arg10[%c0_9, %c0_10] : memref<1x128xf32, #tpu.memory_space<vmem>>, vector<1x128xf32>
    %c0_11 = arith.constant 0 : index
    %c0_12 = arith.constant 0 : index
    %6 = vector.load %arg12[%c0_11, %c0_12] : memref<1x256xf32, #tpu.memory_space<vmem>>, vector<1x256xf32>
    %c0_13 = arith.constant 0 : index
    %c0_14 = arith.constant 0 : index
    %7 = vector.load %arg14[%c0_13, %c0_14] : memref<1x128xf32, #tpu.memory_space<vmem>>, vector<1x128xf32>
    %c0_15 = arith.constant 0 : index
    %c0_16 = arith.constant 0 : index
    %8 = vector.load %arg4[%c0_15, %c0_16] : memref<128x128xf32, #tpu.memory_space<vmem>>, vector<128x128xf32>
    %9 = arith.truncf %8 : vector<128x128xf32> to vector<128x128xbf16>
    %c0_17 = arith.constant 0 : index
    %c0_18 = arith.constant 0 : index
    %10 = vector.load %arg5[%c0_17, %c0_18] : memref<128x128xf32, #tpu.memory_space<vmem>>, vector<128x128xf32>
    %11 = arith.truncf %10 : vector<128x128xf32> to vector<128x128xbf16>
    %c0_19 = arith.constant 0 : index
    %c0_20 = arith.constant 0 : index
    %12 = vector.load %arg11[%c0_19, %c0_20] : memref<128x256xf32, #tpu.memory_space<vmem>>, vector<128x256xf32>
    %13 = arith.truncf %12 : vector<128x256xf32> to vector<128x256xbf16>
    %c0_21 = arith.constant 0 : index
    %c0_22 = arith.constant 0 : index
    %14 = vector.load %arg13[%c0_21, %c0_22] : memref<256x128xf32, #tpu.memory_space<vmem>>, vector<256x128xf32>
    %15 = arith.truncf %14 : vector<256x128xf32> to vector<256x128xbf16>
    %c0_i32 = arith.constant 0 : i32
    %16 = arith.cmpi eq, %arg0, %c0_i32 : i32
    %17 = arith.extui %16 : i1 to i32
    %c0_i32_23 = arith.constant 0 : i32
    %18 = arith.cmpi ne, %17, %c0_i32_23 : i32
    scf.if %18 {
      %c0_84 = arith.constant 0 : index
      %c0_85 = arith.constant 0 : index
      %185 = vector.load %arg2[%c0_84, %c0_85] : memref<8x128xf32, #tpu.memory_space<vmem>>, vector<8x128xf32>
      %c0_86 = arith.constant 0 : index
      %c0_87 = arith.constant 0 : index
      %186 = vector.load %arg18[%c0_86, %c0_87] : memref<8x128xf32, #tpu.memory_space<vmem>>, vector<8x128xf32>
      tpu.vector_store %arg18[%c0_86, %c0_87], %185 {strides = array<i32>} : memref<8x128xf32, #tpu.memory_space<vmem>>, vector<8x128xf32>,
    } else {
    }
    %c0_24 = arith.constant 0 : index
    %c0_25 = arith.constant 0 : index
    %19 = vector.load %arg1[%c0_24, %c0_25] : memref<64x128xf32, #tpu.memory_space<vmem>>, vector<64x128xf32>
    %cst = arith.constant dense<0.000000e+00> : vector<64xf32>
    %20 = vector.multi_reduction <add>, %19, %cst [1] : vector<64x128xf32> to vector<64xf32>
    %21 = vector.shape_cast %20 : vector<64xf32> to vector<64x1xf32>
    %cst_26 = arith.constant 1.280000e+02 : f32
    %22 = vector.broadcast %cst_26 : f32 to vector<64x1xf32>
    %23 = arith.divf %21, %22 : vector<64x1xf32>
    %24 = vector.broadcast %23 : vector<64x1xf32> to vector<64x128xf32>
    %25 = arith.subf %19, %24 : vector<64x128xf32>
    %26 = arith.mulf %25, %25 : vector<64x128xf32>
    %cst_27 = arith.constant dense<0.000000e+00> : vector<64xf32>
    %27 = vector.multi_reduction <add>, %26, %cst_27 [1] : vector<64x128xf32> to vector<64xf32>
    %28 = vector.shape_cast %27 : vector<64xf32> to vector<64x1xf32>
    %cst_28 = arith.constant 1.280000e+02 : f32
    %29 = vector.broadcast %cst_28 : f32 to vector<64x1xf32>
    %30 = arith.divf %28, %29 : vector<64x1xf32>
    %31 = vector.broadcast %23 : vector<64x1xf32> to vector<64x128xf32>
    %32 = arith.subf %19, %31 : vector<64x128xf32>
    %cst_29 = arith.constant 9.99999974E-6 : f32
    %33 = vector.broadcast %cst_29 : f32 to vector<64x1xf32>
    %34 = arith.addf %30, %33 : vector<64x1xf32>
    %35 = math.rsqrt %34 : vector<64x1xf32>
    %36 = vector.broadcast %35 : vector<64x1xf32> to vector<64x128xf32>
    %37 = arith.mulf %32, %36 : vector<64x128xf32>
    %38 = vector.broadcast %2 : vector<1x128xf32> to vector<64x128xf32>
    %39 = arith.mulf %37, %38 : vector<64x128xf32>
    %40 = vector.broadcast %3 : vector<1x128xf32> to vector<64x128xf32>
    %41 = arith.addf %39, %40 : vector<64x128xf32>
    %42 = arith.truncf %41 : vector<64x128xf32> to vector<64x128xbf16>
    %cst_30 = arith.constant dense<0.000000e+00> : vector<64x128xf32>
    %43 = tpu.matmul %42, %9, %cst_30 {dimension_numbers = #tpu.dot_dimension_numbers<[1], [0], [0], [1], [0, 0, 1, 1], [], []>} : vector<64x128xbf16>, vector<128x128xbf16>, vector<64x128xf32> -> vector<64x128xf32>
    %c0_31 = arith.constant 0 : index
    %c0_32 = arith.constant 0 : index
    %44 = vector.load %arg17[%c0_31, %c0_32] : memref<64x128xf32, #tpu.memory_space<vmem>>, vector<64x128xf32>
    tpu.vector_store %arg17[%c0_31, %c0_32], %43 {strides = array<i32>} : memref<64x128xf32, #tpu.memory_space<vmem>>, vector<64x128xf32>,
    %c0_33 = arith.constant 0 : index
    %c0_34 = arith.constant 0 : index
    %45 = vector.load %arg18[%c0_33, %c0_34] : memref<8x128xf32, #tpu.memory_space<vmem>>, vector<8x128xf32>
    %c0_i32_35 = arith.constant 0 : i32
    %c8_i32 = arith.constant 8 : i32
    %46 = arith.muli %c0_i32_35, %c8_i32 : i32
    %47 = tpu.assume_multiple %46, 8 : i32
    %48 = vector.broadcast %0 : vector<1x128xf32> to vector<8x128xf32>
    %49 = arith.mulf %48, %45 : vector<8x128xf32>
    %50 = arith.index_cast %47 : i32 to index
    %c0_36 = arith.constant 0 : index
    %51 = vector.load %arg17[%50, %c0_36] : memref<64x128xf32, #tpu.memory_space<vmem>>, vector<8x128xf32>
    %52 = arith.addf %49, %51 : vector<8x128xf32>
    %53 = arith.index_cast %47 : i32 to index
    %c0_37 = arith.constant 0 : index
    %54 = vector.load %arg17[%53, %c0_37] : memref<64x128xf32, #tpu.memory_space<vmem>>, vector<8x128xf32>
    tpu.vector_store %arg17[%53, %c0_37], %52 {strides = array<i32>} : memref<64x128xf32, #tpu.memory_space<vmem>>, vector<8x128xf32>,
    %c1_i32 = arith.constant 1 : i32
    %c8_i32_38 = arith.constant 8 : i32
    %55 = arith.muli %c1_i32, %c8_i32_38 : i32
    %56 = tpu.assume_multiple %55, 8 : i32
    %57 = vector.broadcast %0 : vector<1x128xf32> to vector<8x128xf32>
    %58 = arith.mulf %57, %52 : vector<8x128xf32>
    %59 = arith.index_cast %56 : i32 to index
    %c0_39 = arith.constant 0 : index
    %60 = vector.load %arg17[%59, %c0_39] : memref<64x128xf32, #tpu.memory_space<vmem>>, vector<8x128xf32>
    %61 = arith.addf %58, %60 : vector<8x128xf32>
    %62 = arith.index_cast %56 : i32 to index
    %c0_40 = arith.constant 0 : index
    %63 = vector.load %arg17[%62, %c0_40] : memref<64x128xf32, #tpu.memory_space<vmem>>, vector<8x128xf32>
    tpu.vector_store %arg17[%62, %c0_40], %61 {strides = array<i32>} : memref<64x128xf32, #tpu.memory_space<vmem>>, vector<8x128xf32>,
    %c2_i32 = arith.constant 2 : i32
    %c8_i32_41 = arith.constant 8 : i32
    %64 = arith.muli %c2_i32, %c8_i32_41 : i32
    %65 = tpu.assume_multiple %64, 8 : i32
    %66 = vector.broadcast %0 : vector<1x128xf32> to vector<8x128xf32>
    %67 = arith.mulf %66, %61 : vector<8x128xf32>
    %68 = arith.index_cast %65 : i32 to index
    %c0_42 = arith.constant 0 : index
    %69 = vector.load %arg17[%68, %c0_42] : memref<64x128xf32, #tpu.memory_space<vmem>>, vector<8x128xf32>
    %70 = arith.addf %67, %69 : vector<8x128xf32>
    %71 = arith.index_cast %65 : i32 to index
    %c0_43 = arith.constant 0 : index
    %72 = vector.load %arg17[%71, %c0_43] : memref<64x128xf32, #tpu.memory_space<vmem>>, vector<8x128xf32>
    tpu.vector_store %arg17[%71, %c0_43], %70 {strides = array<i32>} : memref<64x128xf32, #tpu.memory_space<vmem>>, vector<8x128xf32>,
    %c3_i32 = arith.constant 3 : i32
    %c8_i32_44 = arith.constant 8 : i32
    %73 = arith.muli %c3_i32, %c8_i32_44 : i32
    %74 = tpu.assume_multiple %73, 8 : i32
    %75 = vector.broadcast %0 : vector<1x128xf32> to vector<8x128xf32>
    %76 = arith.mulf %75, %70 : vector<8x128xf32>
    %77 = arith.index_cast %74 : i32 to index
    %c0_45 = arith.constant 0 : index
    %78 = vector.load %arg17[%77, %c0_45] : memref<64x128xf32, #tpu.memory_space<vmem>>, vector<8x128xf32>
    %79 = arith.addf %76, %78 : vector<8x128xf32>
    %80 = arith.index_cast %74 : i32 to index
    %c0_46 = arith.constant 0 : index
    %81 = vector.load %arg17[%80, %c0_46] : memref<64x128xf32, #tpu.memory_space<vmem>>, vector<8x128xf32>
    tpu.vector_store %arg17[%80, %c0_46], %79 {strides = array<i32>} : memref<64x128xf32, #tpu.memory_space<vmem>>, vector<8x128xf32>,
    %c4_i32 = arith.constant 4 : i32
    %c8_i32_47 = arith.constant 8 : i32
    %82 = arith.muli %c4_i32, %c8_i32_47 : i32
    %83 = tpu.assume_multiple %82, 8 : i32
    %84 = vector.broadcast %0 : vector<1x128xf32> to vector<8x128xf32>
    %85 = arith.mulf %84, %79 : vector<8x128xf32>
    %86 = arith.index_cast %83 : i32 to index
    %c0_48 = arith.constant 0 : index
    %87 = vector.load %arg17[%86, %c0_48] : memref<64x128xf32, #tpu.memory_space<vmem>>, vector<8x128xf32>
    %88 = arith.addf %85, %87 : vector<8x128xf32>
    %89 = arith.index_cast %83 : i32 to index
    %c0_49 = arith.constant 0 : index
    %90 = vector.load %arg17[%89, %c0_49] : memref<64x128xf32, #tpu.memory_space<vmem>>, vector<8x128xf32>
    tpu.vector_store %arg17[%89, %c0_49], %88 {strides = array<i32>} : memref<64x128xf32, #tpu.memory_space<vmem>>, vector<8x128xf32>,
    %c5_i32 = arith.constant 5 : i32
    %c8_i32_50 = arith.constant 8 : i32
    %91 = arith.muli %c5_i32, %c8_i32_50 : i32
    %92 = tpu.assume_multiple %91, 8 : i32
    %93 = vector.broadcast %0 : vector<1x128xf32> to vector<8x128xf32>
    %94 = arith.mulf %93, %88 : vector<8x128xf32>
    %95 = arith.index_cast %92 : i32 to index
    %c0_51 = arith.constant 0 : index
    %96 = vector.load %arg17[%95, %c0_51] : memref<64x128xf32, #tpu.memory_space<vmem>>, vector<8x128xf32>
    %97 = arith.addf %94, %96 : vector<8x128xf32>
    %98 = arith.index_cast %92 : i32 to index
    %c0_52 = arith.constant 0 : index
    %99 = vector.load %arg17[%98, %c0_52] : memref<64x128xf32, #tpu.memory_space<vmem>>, vector<8x128xf32>
    tpu.vector_store %arg17[%98, %c0_52], %97 {strides = array<i32>} : memref<64x128xf32, #tpu.memory_space<vmem>>, vector<8x128xf32>,
    %c6_i32 = arith.constant 6 : i32
    %c8_i32_53 = arith.constant 8 : i32
    %100 = arith.muli %c6_i32, %c8_i32_53 : i32
    %101 = tpu.assume_multiple %100, 8 : i32
    %102 = vector.broadcast %0 : vector<1x128xf32> to vector<8x128xf32>
    %103 = arith.mulf %102, %97 : vector<8x128xf32>
    %104 = arith.index_cast %101 : i32 to index
    %c0_54 = arith.constant 0 : index
    %105 = vector.load %arg17[%104, %c0_54] : memref<64x128xf32, #tpu.memory_space<vmem>>, vector<8x128xf32>
    %106 = arith.addf %103, %105 : vector<8x128xf32>
    %107 = arith.index_cast %101 : i32 to index
    %c0_55 = arith.constant 0 : index
    %108 = vector.load %arg17[%107, %c0_55] : memref<64x128xf32, #tpu.memory_space<vmem>>, vector<8x128xf32>
    tpu.vector_store %arg17[%107, %c0_55], %106 {strides = array<i32>} : memref<64x128xf32, #tpu.memory_space<vmem>>, vector<8x128xf32>,
    %c7_i32 = arith.constant 7 : i32
    %c8_i32_56 = arith.constant 8 : i32
    %109 = arith.muli %c7_i32, %c8_i32_56 : i32
    %110 = tpu.assume_multiple %109, 8 : i32
    %111 = vector.broadcast %0 : vector<1x128xf32> to vector<8x128xf32>
    %112 = arith.mulf %111, %106 : vector<8x128xf32>
    %113 = arith.index_cast %110 : i32 to index
    %c0_57 = arith.constant 0 : index
    %114 = vector.load %arg17[%113, %c0_57] : memref<64x128xf32, #tpu.memory_space<vmem>>, vector<8x128xf32>
    %115 = arith.addf %112, %114 : vector<8x128xf32>
    %116 = arith.index_cast %110 : i32 to index
    %c0_58 = arith.constant 0 : index
    %117 = vector.load %arg17[%116, %c0_58] : memref<64x128xf32, #tpu.memory_space<vmem>>, vector<8x128xf32>
    tpu.vector_store %arg17[%116, %c0_58], %115 {strides = array<i32>} : memref<64x128xf32, #tpu.memory_space<vmem>>, vector<8x128xf32>,
    %c8_i32_59 = arith.constant 8 : i32
    %c0_60 = arith.constant 0 : index
    %c0_61 = arith.constant 0 : index
    %118 = vector.load %arg18[%c0_60, %c0_61] : memref<8x128xf32, #tpu.memory_space<vmem>>, vector<8x128xf32>
    tpu.vector_store %arg18[%c0_60, %c0_61], %115 {strides = array<i32>} : memref<8x128xf32, #tpu.memory_space<vmem>>, vector<8x128xf32>,
    %c0_62 = arith.constant 0 : index
    %c0_63 = arith.constant 0 : index
    %119 = vector.load %arg16[%c0_62, %c0_63] : memref<8x128xf32, #tpu.memory_space<vmem>>, vector<8x128xf32>
    tpu.vector_store %arg16[%c0_62, %c0_63], %115 {strides = array<i32>} : memref<8x128xf32, #tpu.memory_space<vmem>>, vector<8x128xf32>,
    %c0_64 = arith.constant 0 : index
    %c0_65 = arith.constant 0 : index
    %120 = vector.load %arg17[%c0_64, %c0_65] : memref<64x128xf32, #tpu.memory_space<vmem>>, vector<64x128xf32>
    %121 = arith.truncf %120 : vector<64x128xf32> to vector<64x128xbf16>
    %cst_66 = arith.constant dense<0.000000e+00> : vector<64x128xf32>
    %122 = tpu.matmul %121, %11, %cst_66 {dimension_numbers = #tpu.dot_dimension_numbers<[1], [0], [0], [1], [0, 0, 1, 1], [], []>} : vector<64x128xbf16>, vector<128x128xbf16>, vector<64x128xf32> -> vector<64x128xf32>
    %123 = vector.broadcast %1 : vector<1x128xf32> to vector<64x128xf32>
    %124 = arith.mulf %41, %123 : vector<64x128xf32>
    %125 = arith.addf %122, %124 : vector<64x128xf32>
    %cst_67 = arith.constant 5.000000e-01 : f32
    %126 = vector.broadcast %cst_67 : f32 to vector<64x128xf32>
    %127 = arith.mulf %126, %125 : vector<64x128xf32>
    %cst_68 = arith.constant 4.471500e-02 : f32
    %128 = vector.broadcast %cst_68 : f32 to vector<64x128xf32>
    %129 = arith.mulf %128, %125 : vector<64x128xf32>
    %130 = arith.mulf %129, %125 : vector<64x128xf32>
    %131 = arith.mulf %130, %125 : vector<64x128xf32>
    %132 = arith.addf %125, %131 : vector<64x128xf32>
    %cst_69 = arith.constant 0.797884583 : f32
    %133 = vector.broadcast %cst_69 : f32 to vector<64x128xf32>
    %134 = arith.mulf %133, %132 : vector<64x128xf32>
    %135 = math.tanh %134 : vector<64x128xf32>
    %cst_70 = arith.constant 1.000000e+00 : f32
    %136 = vector.broadcast %cst_70 : f32 to vector<64x128xf32>
    %137 = arith.addf %136, %135 : vector<64x128xf32>
    %138 = arith.mulf %127, %137 : vector<64x128xf32>
    %139 = arith.addf %19, %138 : vector<64x128xf32>
    %cst_71 = arith.constant dense<0.000000e+00> : vector<64xf32>
    %140 = vector.multi_reduction <add>, %139, %cst_71 [1] : vector<64x128xf32> to vector<64xf32>
    %141 = vector.shape_cast %140 : vector<64xf32> to vector<64x1xf32>
    %cst_72 = arith.constant 1.280000e+02 : f32
    %142 = vector.broadcast %cst_72 : f32 to vector<64x1xf32>
    %143 = arith.divf %141, %142 : vector<64x1xf32>
    %144 = vector.broadcast %143 : vector<64x1xf32> to vector<64x128xf32>
    %145 = arith.subf %139, %144 : vector<64x128xf32>
    %146 = arith.mulf %145, %145 : vector<64x128xf32>
    %cst_73 = arith.constant dense<0.000000e+00> : vector<64xf32>
    %147 = vector.multi_reduction <add>, %146, %cst_73 [1] : vector<64x128xf32> to vector<64xf32>
    %148 = vector.shape_cast %147 : vector<64xf32> to vector<64x1xf32>
    %cst_74 = arith.constant 1.280000e+02 : f32
    %149 = vector.broadcast %cst_74 : f32 to vector<64x1xf32>
    %150 = arith.divf %148, %149 : vector<64x1xf32>
    %151 = vector.broadcast %143 : vector<64x1xf32> to vector<64x128xf32>
    %152 = arith.subf %139, %151 : vector<64x128xf32>
    %cst_75 = arith.constant 9.99999974E-6 : f32
    %153 = vector.broadcast %cst_75 : f32 to vector<64x1xf32>
    %154 = arith.addf %150, %153 : vector<64x1xf32>
    %155 = math.rsqrt %154 : vector<64x1xf32>
    %156 = vector.broadcast %155 : vector<64x1xf32> to vector<64x128xf32>
    %157 = arith.mulf %152, %156 : vector<64x128xf32>
    %158 = vector.broadcast %4 : vector<1x128xf32> to vector<64x128xf32>
    %159 = arith.mulf %157, %158 : vector<64x128xf32>
    %160 = vector.broadcast %5 : vector<1x128xf32> to vector<64x128xf32>
    %161 = arith.addf %159, %160 : vector<64x128xf32>
    %162 = arith.truncf %161 : vector<64x128xf32> to vector<64x128xbf16>
    %cst_76 = arith.constant dense<0.000000e+00> : vector<64x256xf32>
    %163 = tpu.matmul %162, %13, %cst_76 {dimension_numbers = #tpu.dot_dimension_numbers<[1], [0], [0], [1], [0, 0, 1, 1], [], []>} : vector<64x128xbf16>, vector<128x256xbf16>, vector<64x256xf32> -> vector<64x256xf32>
    %164 = vector.broadcast %6 : vector<1x256xf32> to vector<64x256xf32>
    %165 = arith.addf %163, %164 : vector<64x256xf32>
    %cst_77 = arith.constant 5.000000e-01 : f32
    %166 = vector.broadcast %cst_77 : f32 to vector<64x256xf32>
    %167 = arith.mulf %166, %165 : vector<64x256xf32>
    %cst_78 = arith.constant 4.471500e-02 : f32
    %168 = vector.broadcast %cst_78 : f32 to vector<64x256xf32>
    %169 = arith.mulf %168, %165 : vector<64x256xf32>
    %170 = arith.mulf %169, %165 : vector<64x256xf32>
    %171 = arith.mulf %170, %165 : vector<64x256xf32>
    %172 = arith.addf %165, %171 : vector<64x256xf32>
    %cst_79 = arith.constant 0.797884583 : f32
    %173 = vector.broadcast %cst_79 : f32 to vector<64x256xf32>
    %174 = arith.mulf %173, %172 : vector<64x256xf32>
    %175 = math.tanh %174 : vector<64x256xf32>
    %cst_80 = arith.constant 1.000000e+00 : f32
    %176 = vector.broadcast %cst_80 : f32 to vector<64x256xf32>
    %177 = arith.addf %176, %175 : vector<64x256xf32>
    %178 = arith.mulf %167, %177 : vector<64x256xf32>
    %179 = arith.truncf %178 : vector<64x256xf32> to vector<64x256xbf16>
    %cst_81 = arith.constant dense<0.000000e+00> : vector<64x128xf32>
    %180 = tpu.matmul %179, %15, %cst_81 {dimension_numbers = #tpu.dot_dimension_numbers<[1], [0], [0], [1], [0, 0, 1, 1], [], []>} : vector<64x256xbf16>, vector<256x128xbf16>, vector<64x128xf32> -> vector<64x128xf32>
    %181 = vector.broadcast %7 : vector<1x128xf32> to vector<64x128xf32>
    %182 = arith.addf %180, %181 : vector<64x128xf32>
    %183 = arith.addf %182, %139 : vector<64x128xf32>
    %c0_82 = arith.constant 0 : index
    %c0_83 = arith.constant 0 : index
    %184 = vector.load %arg15[%c0_82, %c0_83] : memref<64x128xf32, #tpu.memory_space<vmem>>, vector<64x128xf32>
    tpu.vector_store %arg15[%c0_82, %c0_83], %183 {strides = array<i32>} : memref<64x128xf32, #tpu.memory_space<vmem>>, vector<64x128xf32>,
    return
  }
  func.func @transform_0(%arg0: i32) -> (i32, i32) {
    %c0_i32 = arith.constant 0 : i32
    %c0_i32_0 = arith.constant 0 : i32
    return %arg0, %c0_i32 : i32, i32
  }
  func.func @transform_1(%arg0: i32) -> (i32, i32) {
    %c0_i32 = arith.constant 0 : i32
    %c0_i32_0 = arith.constant 0 : i32
    %c0_i32_1 = arith.constant 0 : i32
    return %c0_i32, %c0_i32_0 : i32, i32
  }
  func.func @transform_2(%arg0: i32) -> (i32, i32) {
    %c0_i32 = arith.constant 0 : i32
    %c0_i32_0 = arith.constant 0 : i32
    %c0_i32_1 = arith.constant 0 : i32
    return %c0_i32, %c0_i32_0 : i32, i32
  }
  func.func @transform_3(%arg0: i32) -> (i32, i32) {
    %c0_i32 = arith.constant 0 : i32
    %c0_i32_0 = arith.constant 0 : i32
    %c0_i32_1 = arith.constant 0 : i32
    return %c0_i32, %c0_i32_0 : i32, i32
  }
  func.func @transform_4(%arg0: i32) -> (i32, i32) {
    %c0_i32 = arith.constant 0 : i32
    %c0_i32_0 = arith.constant 0 : i32
    %c0_i32_1 = arith.constant 0 : i32
    return %c0_i32, %c0_i32_0 : i32, i32
  }
  func.func @transform_5(%arg0: i32) -> (i32, i32) {
    %c0_i32 = arith.constant 0 : i32
    %c0_i32_0 = arith.constant 0 : i32
    %c0_i32_1 = arith.constant 0 : i32
    return %c0_i32, %c0_i32_0 : i32, i32
  }
  func.func @transform_6(%arg0: i32) -> (i32, i32) {
    %c0_i32 = arith.constant 0 : i32
    %c0_i32_0 = arith.constant 0 : i32
    %c0_i32_1 = arith.constant 0 : i32
    return %c0_i32, %c0_i32_0 : i32, i32
  }
  func.func @transform_7(%arg0: i32) -> (i32, i32) {
    %c0_i32 = arith.constant 0 : i32
    %c0_i32_0 = arith.constant 0 : i32
    %c0_i32_1 = arith.constant 0 : i32
    return %c0_i32, %c0_i32_0 : i32, i32
  }
  func.func @transform_8(%arg0: i32) -> (i32, i32) {
    %c0_i32 = arith.constant 0 : i32
    %c0_i32_0 = arith.constant 0 : i32
    %c0_i32_1 = arith.constant 0 : i32
    return %c0_i32, %c0_i32_0 : i32, i32
  }
  func.func @transform_9(%arg0: i32) -> (i32, i32) {
    %c0_i32 = arith.constant 0 : i32
    %c0_i32_0 = arith.constant 0 : i32
    %c0_i32_1 = arith.constant 0 : i32
    return %c0_i32, %c0_i32_0 : i32, i32
  }
  func.func @transform_10(%arg0: i32) -> (i32, i32) {
    %c0_i32 = arith.constant 0 : i32
    %c0_i32_0 = arith.constant 0 : i32
    %c0_i32_1 = arith.constant 0 : i32
    return %c0_i32, %c0_i32_0 : i32, i32
  }
  func.func @transform_11(%arg0: i32) -> (i32, i32) {
    %c0_i32 = arith.constant 0 : i32
    %c0_i32_0 = arith.constant 0 : i32
    %c0_i32_1 = arith.constant 0 : i32
    return %c0_i32, %c0_i32_0 : i32, i32
  }
  func.func @transform_12(%arg0: i32) -> (i32, i32) {
    %c0_i32 = arith.constant 0 : i32
    %c0_i32_0 = arith.constant 0 : i32
    %c0_i32_1 = arith.constant 0 : i32
    return %c0_i32, %c0_i32_0 : i32, i32
  }
  func.func @transform_13(%arg0: i32) -> (i32, i32) {
    %c0_i32 = arith.constant 0 : i32
    %c0_i32_0 = arith.constant 0 : i32
    %c0_i32_1 = arith.constant 0 : i32
    return %c0_i32, %c0_i32_0 : i32, i32
  }
  func.func @transform_14(%arg0: i32) -> (i32, i32) {
    %c0_i32 = arith.constant 0 : i32
    %c0_i32_0 = arith.constant 0 : i32
    return %arg0, %c0_i32 : i32, i32
  }
  func.func @transform_15(%arg0: i32) -> (i32, i32) {
    %c0_i32 = arith.constant 0 : i32
    %c0_i32_0 = arith.constant 0 : i32
    %c0_i32_1 = arith.constant 0 : i32
    return %c0_i32, %c0_i32_0 : i32, i32
  }
}

</mosaic_0001>

<llo_original>
// kernel: mamba_block.1
$region0: #{mamba_block.1}
  #allocation0 [shape = 'u32[]', space=smem, size = 0x4, offset = 0x4, fixed_abs, tag = 'smem constant byte address 0x4 - core index']
  #allocation1 [shape = 'u32[144,128]{1,0:T(1,128)}', space=vmem, size = 0x12000, scoped, tag = 'internal scratch']
  #allocation2 [shape = 'f32[64,128]{1,0:T(8,128)}', space=vmem, size = 0x8000, scoped, tag = 'scratch operand']
  #allocation3 [shape = 'f32[8,128]{1,0:T(8,128)}', space=vmem, size = 0x1000, scoped, tag = 'scratch operand']
  %s0 = inlined_call_operand.vmem [shape: f32[128,128], index: 0, kind: input, shape index: {}]
  %s1 = inlined_call_operand.vmem [shape: f32[8,128], index: 1, kind: input, shape index: {}]
  %s2 = inlined_call_operand.vmem [shape: f32[1,128], index: 2, kind: input, shape index: {}]
  %s3 = inlined_call_operand.hbm [shape: f32[128,128], index: 3, kind: input, shape index: {}]
  %s4 = inlined_call_operand.hbm [shape: f32[128,128], index: 4, kind: input, shape index: {}]
  %s5 = inlined_call_operand.vmem [shape: f32[1,128], index: 5, kind: input, shape index: {}]
  %s6 = inlined_call_operand.vmem [shape: f32[1,128], index: 6, kind: input, shape index: {}]
  %s7 = inlined_call_operand.vmem [shape: f32[1,128], index: 7, kind: input, shape index: {}]
  %s8 = inlined_call_operand.vmem [shape: f32[1,128], index: 8, kind: input, shape index: {}]
  %s9 = inlined_call_operand.vmem [shape: f32[1,128], index: 9, kind: input, shape index: {}]
  %s10 = inlined_call_operand.vmem [shape: f32[128,256], index: 10, kind: input, shape index: {}]
  %s11 = inlined_call_operand.vmem [shape: f32[1,256], index: 11, kind: input, shape index: {}]
  %s12 = inlined_call_operand.hbm [shape: f32[256,128], index: 12, kind: input, shape index: {}]
  %s13 = inlined_call_operand.vmem [shape: f32[1,128], index: 13, kind: input, shape index: {}]
  %s14 = inlined_call_operand.vmem [shape: f32[128,128], index: 14, kind: output, shape index: {0}]
  %s15 = inlined_call_operand.hbm [shape: f32[8,128], index: 15, kind: output, shape index: {1}]
  %16 = xla_tuple %s14, %s15
  %s17 = sld [smem:[#allocation0]]
  $region113: #{mamba_block.1} parent=0
    _
  %s19 = ssub.s32 1, %s17
  %s20 = scalar_select 0, %s19, %s17
  $region1: #{mamba_block.1} parent=0
    #allocation4 [shape = 'u8[65536]{0}', space=vmem, size = 0x10000, scoped, tag = 'input window, operand 3, single buffered']
    #allocation5 [shape = 's32[2]{0}', space=sflag, size = 0x8, scoped, tag = 'scoped memory for mamba_block.1']
    #allocation6 [shape = 's32[2]{0}', space=sflag, size = 0x8, scoped, tag = 'scoped memory for mamba_block.1']
    #allocation7 [shape = 'u8[65536]{0}', space=vmem, size = 0x10000, scoped, tag = 'input window, operand 4, single buffered']
    #allocation8 [shape = 's32[1]{0}', space=sflag, size = 0x4, scoped, tag = 'scoped memory for mamba_block.1']
    #allocation9 [shape = 'u8[131072]{0}', space=vmem, size = 0x20000, scoped, tag = 'input window, operand 12, single buffered']
    #allocation10 [shape = 'u8[4096]{0}', space=vmem, size = 0x1000, scoped, tag = 'output window, operand 1, single buffered']
    %21 = vsyncpa [#allocation5], 0
    %22 = vsyncpa [#allocation8], 0
    %23 = vsyncpa [#allocation6], 0
    loop: start=0, step=1, limit=4
    $region2: #{mamba_block.1} parent=1 // loop_pre_header
      _
    $region3: #{mamba_block.1} parent=1 // loop_header
      %s25 = sphi 0, %s29
      %p26 = scmp.ge.s32.totalorder %s25, 4
      %s35 = sphi 0, %s37
      %s38 = sphi 0, %s35
      %s39 = sphi 0, %s38
      %s55 = sphi 0, %s39
      %s59 = sphi 0, %s59
      %s61 = sphi 0, %s59
      %s62 = sphi 0, %s61
      %s76 = sphi 0, %s62
      %s80 = sphi 0, %s80
      %s82 = sphi 0, %s80
      %s83 = sphi 0, %s82
      %s97 = sphi 0, %s83
      %s101 = sphi 0, %s101
      %s103 = sphi 0, %s101
      %s104 = sphi 0, %s103
      %s118 = sphi 0, %s104
      %s122 = sphi 0, %s122
      %s124 = sphi 0, %s122
      %s125 = sphi 0, %s124
      %s139 = sphi 0, %s125
      %s143 = sphi 0, %s143
      %s145 = sphi 0, %s143
      %s146 = sphi 0, %s145
      %s160 = sphi 0, %s146
      %s164 = sphi 0, %s164
      %s166 = sphi 0, %s164
      %s167 = sphi 0, %s166
      %s181 = sphi 0, %s167
      %s185 = sphi 0, %s185
      %s187 = sphi 0, %s185
      %s188 = sphi 0, %s187
      %s202 = sphi 0, %s188
      %s206 = sphi 0, %s206
      %s208 = sphi 0, %s206
      %s209 = sphi 0, %s208
      %s223 = sphi 0, %s209
      %s227 = sphi 0, %s227
      %s229 = sphi 0, %s227
      %s230 = sphi 0, %s229
      %s244 = sphi 0, %s230
      %s248 = sphi 0, %s248
      %s250 = sphi 0, %s248
      %s251 = sphi 0, %s250
      %s265 = sphi 0, %s251
      %s269 = sphi 0, %s269
      %s271 = sphi 0, %s269
      %s272 = sphi 0, %s271
      %s286 = sphi 0, %s272
      %s290 = sphi 0, %s290
      %s292 = sphi 0, %s290
      %s293 = sphi 0, %s292
      %s307 = sphi 0, %s293
      %s311 = sphi 0, %s311
      %s313 = sphi 0, %s311
      %s314 = sphi 0, %s313
      %s328 = sphi 0, %s314
      %s334 = sphi 0, %s336
      %s337 = sphi 0, %s334
      %s338 = sphi 0, %s337
      %s354 = sphi 0, %s338
      %s358 = sphi 0, %s358
      %s360 = sphi 0, %s358
      %s361 = sphi 0, %s360
      %s375 = sphi 0, %s361
    $region4: #{mamba_block.1} parent=1 // loop_header_branch
      %28 = sbr.rel (%p26) target = $region8
    $region5: #{mamba_block.1} parent=1 // loop_body
      %s30 = ssub.s32 %s25, 1
      %s31 = ssub.s32 %s25, 2
      %s32 = sadd.s32 %s25, 1
      %s33 = ssub.s32 %s25, %s32
      %p34 = scmp.eq.s32.totalorder %s33, 0
      %s36 = sadd.s32 %s35, 1
      %s37 = scalar_select %p34, %s35, %s36
      %p40 = pneg %p34
      %p41 = scmp.eq.s32.totalorder %s25, 1
      %p42 = por %p40, %p41
      %p43 = scmp.ne.s32.totalorder %s35, %s38
      %p44 = scmp.eq.s32.totalorder %s25, 0
      %p45 = por %p43, %p44
      %p46 = scmp.ne.s32.totalorder %s35, %s38
      %p47 = scmp.eq.s32.totalorder %s30, 1
      %p48 = por %p46, %p47
      %p49 = scmp.ne.s32.totalorder %s38, %s39
      %p50 = scmp.eq.s32.totalorder %s30, 0
      %p51 = por %p49, %p50
      %p52 = scmp.ne.s32.totalorder %s38, %s39
      %p53 = scmp.eq.s32.totalorder %s31, 1
      %p54 = por %p52, %p53
      %p56 = scmp.ne.s32.totalorder %s39, %s55
      %p57 = scmp.eq.s32.totalorder %s31, 0
      %p58 = por %p56, %p57
      %s60 = sadd.s32 %s59, 1
      %p63 = scmp.eq.s32.totalorder %s25, 1
      %p64 = scmp.ne.s32.totalorder %s59, %s61
      %p65 = scmp.eq.s32.totalorder %s25, 0
      %p66 = por %p64, %p65
      %p67 = scmp.ne.s32.totalorder %s59, %s61
      %p68 = scmp.eq.s32.totalorder %s30, 1
      %p69 = por %p67, %p68
      %p70 = scmp.ne.s32.totalorder %s61, %s62
      %p71 = scmp.eq.s32.totalorder %s30, 0
      %p72 = por %p70, %p71
      %p73 = scmp.ne.s32.totalorder %s61, %s62
      %p74 = scmp.eq.s32.totalorder %s31, 1
      %p75 = por %p73, %p74
      %p77 = scmp.ne.s32.totalorder %s62, %s76
      %p78 = scmp.eq.s32.totalorder %s31, 0
      %p79 = por %p77, %p78
      %s81 = sadd.s32 %s80, 1
      %p84 = scmp.eq.s32.totalorder %s25, 1
      %p85 = scmp.ne.s32.totalorder %s80, %s82
      %p86 = scmp.eq.s32.totalorder %s25, 0
      %p87 = por %p85, %p86
      %p88 = scmp.ne.s32.totalorder %s80, %s82
      %p89 = scmp.eq.s32.totalorder %s30, 1
      %p90 = por %p88, %p89
      %p91 = scmp.ne.s32.totalorder %s82, %s83
      %p92 = scmp.eq.s32.totalorder %s30, 0
      %p93 = por %p91, %p92
      %p94 = scmp.ne.s32.totalorder %s82, %s83
      %p95 = scmp.eq.s32.totalorder %s31, 1
      %p96 = por %p94, %p95
      %p98 = scmp.ne.s32.totalorder %s83, %s97
      %p99 = scmp.eq.s32.totalorder %s31, 0
      %p100 = por %p98, %p99
      %s102 = sadd.s32 %s101, 1
      %p105 = scmp.eq.s32.totalorder %s25, 1
      %p106 = scmp.ne.s32.totalorder %s101, %s103
      %p107 = scmp.eq.s32.totalorder %s25, 0
      %p108 = por %p106, %p107
      %p109 = scmp.ne.s32.totalorder %s101, %s103
      %p110 = scmp.eq.s32.totalorder %s30, 1
      %p111 = por %p109, %p110
      %p112 = scmp.ne.s32.totalorder %s103, %s104
      %p113 = scmp.eq.s32.totalorder %s30, 0
      %p114 = por %p112, %p113
      %p115 = scmp.ne.s32.totalorder %s103, %s104
      %p116 = scmp.eq.s32.totalorder %s31, 1
      %p117 = por %p115, %p116
      %p119 = scmp.ne.s32.totalorder %s104, %s118
      %p120 = scmp.eq.s32.totalorder %s31, 0
      %p121 = por %p119, %p120
      %s123 = sadd.s32 %s122, 1
      %p126 = scmp.eq.s32.totalorder %s25, 1
      %p127 = scmp.ne.s32.totalorder %s122, %s124
      %p128 = scmp.eq.s32.totalorder %s25, 0
      %p129 = por %p127, %p128
      %p130 = scmp.ne.s32.totalorder %s122, %s124
      %p131 = scmp.eq.s32.totalorder %s30, 1
      %p132 = por %p130, %p131
      %p133 = scmp.ne.s32.totalorder %s124, %s125
      %p134 = scmp.eq.s32.totalorder %s30, 0
      %p135 = por %p133, %p134
      %p136 = scmp.ne.s32.totalorder %s124, %s125
      %p137 = scmp.eq.s32.totalorder %s31, 1
      %p138 = por %p136, %p137
      %p140 = scmp.ne.s32.totalorder %s125, %s139
      %p141 = scmp.eq.s32.totalorder %s31, 0
      %p142 = por %p140, %p141
      %s144 = sadd.s32 %s143, 1
      %p147 = scmp.eq.s32.totalorder %s25, 1
      %p148 = scmp.ne.s32.totalorder %s143, %s145
      %p149 = scmp.eq.s32.totalorder %s25, 0
      %p150 = por %p148, %p149
      %p151 = scmp.ne.s32.totalorder %s143, %s145
      %p152 = scmp.eq.s32.totalorder %s30, 1
      %p153 = por %p151, %p152
      %p154 = scmp.ne.s32.totalorder %s145, %s146
      %p155 = scmp.eq.s32.totalorder %s30, 0
      %p156 = por %p154, %p155
      %p157 = scmp.ne.s32.totalorder %s145, %s146
      %p158 = scmp.eq.s32.totalorder %s31, 1
      %p159 = por %p157, %p158
      %p161 = scmp.ne.s32.totalorder %s146, %s160
      %p162 = scmp.eq.s32.totalorder %s31, 0
      %p163 = por %p161, %p162
      %s165 = sadd.s32 %s164, 1
      %p168 = scmp.eq.s32.totalorder %s25, 1
      %p169 = scmp.ne.s32.totalorder %s164, %s166
      %p170 = scmp.eq.s32.totalorder %s25, 0
      %p171 = por %p169, %p170
      %p172 = scmp.ne.s32.totalorder %s164, %s166
      %p173 = scmp.eq.s32.totalorder %s30, 1
      %p174 = por %p172, %p173
      %p175 = scmp.ne.s32.totalorder %s166, %s167
      %p176 = scmp.eq.s32.totalorder %s30, 0
      %p177 = por %p175, %p176
      %p178 = scmp.ne.s32.totalorder %s166, %s167
      %p179 = scmp.eq.s32.totalorder %s31, 1
      %p180 = por %p178, %p179
      %p182 = scmp.ne.s32.totalorder %s167, %s181
      %p183 = scmp.eq.s32.totalorder %s31, 0
      %p184 = por %p182, %p183
      %s186 = sadd.s32 %s185, 1
      %p189 = scmp.eq.s32.totalorder %s25, 1
      %p190 = scmp.ne.s32.totalorder %s185, %s187
      %p191 = scmp.eq.s32.totalorder %s25, 0
      %p192 = por %p190, %p191
      %p193 = scmp.ne.s32.totalorder %s185, %s187
      %p194 = scmp.eq.s32.totalorder %s30, 1
      %p195 = por %p193, %p194
      %p196 = scmp.ne.s32.totalorder %s187, %s188
      %p197 = scmp.eq.s32.totalorder %s30, 0
      %p198 = por %p196, %p197
      %p199 = scmp.ne.s32.totalorder %s187, %s188
      %p200 = scmp.eq.s32.totalorder %s31, 1
      %p201 = por %p199, %p200
      %p203 = scmp.ne.s32.totalorder %s188, %s202
      %p204 = scmp.eq.s32.totalorder %s31, 0
      %p205 = por %p203, %p204
      %s207 = sadd.s32 %s206, 1
      %p210 = scmp.eq.s32.totalorder %s25, 1
      %p211 = scmp.ne.s32.totalorder %s206, %s208
      %p212 = scmp.eq.s32.totalorder %s25, 0
      %p213 = por %p211, %p212
      %p214 = scmp.ne.s32.totalorder %s206, %s208
      %p215 = scmp.eq.s32.totalorder %s30, 1
      %p216 = por %p214, %p215
      %p217 = scmp.ne.s32.totalorder %s208, %s209
      %p218 = scmp.eq.s32.totalorder %s30, 0
      %p219 = por %p217, %p218
      %p220 = scmp.ne.s32.totalorder %s208, %s209
      %p221 = scmp.eq.s32.totalorder %s31, 1
      %p222 = por %p220, %p221
      %p224 = scmp.ne.s32.totalorder %s209, %s223
      %p225 = scmp.eq.s32.totalorder %s31, 0
      %p226 = por %p224, %p225
      %s228 = sadd.s32 %s227, 1
      %p231 = scmp.eq.s32.totalorder %s25, 1
      %p232 = scmp.ne.s32.totalorder %s227, %s229
      %p233 = scmp.eq.s32.totalorder %s25, 0
      %p234 = por %p232, %p233
      %p235 = scmp.ne.s32.totalorder %s227, %s229
      %p236 = scmp.eq.s32.totalorder %s30, 1
      %p237 = por %p235, %p236
      %p238 = scmp.ne.s32.totalorder %s229, %s230
      %p239 = scmp.eq.s32.totalorder %s30, 0
      %p240 = por %p238, %p239
      %p241 = scmp.ne.s32.totalorder %s229, %s230
      %p242 = scmp.eq.s32.totalorder %s31, 1
      %p243 = por %p241, %p242
      %p245 = scmp.ne.s32.totalorder %s230, %s244
      %p246 = scmp.eq.s32.totalorder %s31, 0
      %p247 = por %p245, %p246
      %s249 = sadd.s32 %s248, 1
      %p252 = scmp.eq.s32.totalorder %s25, 1
      %p253 = scmp.ne.s32.totalorder %s248, %s250
      %p254 = scmp.eq.s32.totalorder %s25, 0
      %p255 = por %p253, %p254
      %p256 = scmp.ne.s32.totalorder %s248, %s250
      %p257 = scmp.eq.s32.totalorder %s30, 1
      %p258 = por %p256, %p257
      %p259 = scmp.ne.s32.totalorder %s250, %s251
      %p260 = scmp.eq.s32.totalorder %s30, 0
      %p261 = por %p259, %p260
      %p262 = scmp.ne.s32.totalorder %s250, %s251
      %p263 = scmp.eq.s32.totalorder %s31, 1
      %p264 = por %p262, %p263
      %p266 = scmp.ne.s32.totalorder %s251, %s265
      %p267 = scmp.eq.s32.totalorder %s31, 0
      %p268 = por %p266, %p267
      %s270 = sadd.s32 %s269, 1
      %p273 = scmp.eq.s32.totalorder %s25, 1
      %p274 = scmp.ne.s32.totalorder %s269, %s271
      %p275 = scmp.eq.s32.totalorder %s25, 0
      %p276 = por %p274, %p275
      %p277 = scmp.ne.s32.totalorder %s269, %s271
      %p278 = scmp.eq.s32.totalorder %s30, 1
      %p279 = por %p277, %p278
      %p280 = scmp.ne.s32.totalorder %s271, %s272
      %p281 = scmp.eq.s32.totalorder %s30, 0
      %p282 = por %p280, %p281
      %p283 = scmp.ne.s32.totalorder %s271, %s272
      %p284 = scmp.eq.s32.totalorder %s31, 1
      %p285 = por %p283, %p284
      %p287 = scmp.ne.s32.totalorder %s272, %s286
      %p288 = scmp.eq.s32.totalorder %s31, 0
      %p289 = por %p287, %p288
      %s291 = sadd.s32 %s290, 1
      %p294 = scmp.eq.s32.totalorder %s25, 1
      %p295 = scmp.ne.s32.totalorder %s290, %s292
      %p296 = scmp.eq.s32.totalorder %s25, 0
      %p297 = por %p295, %p296
      %p298 = scmp.ne.s32.totalorder %s290, %s292
      %p299 = scmp.eq.s32.totalorder %s30, 1
      %p300 = por %p298, %p299
      %p301 = scmp.ne.s32.totalorder %s292, %s293
      %p302 = scmp.eq.s32.totalorder %s30, 0
      %p303 = por %p301, %p302
      %p304 = scmp.ne.s32.totalorder %s292, %s293
      %p305 = scmp.eq.s32.totalorder %s31, 1
      %p306 = por %p304, %p305
      %p308 = scmp.ne.s32.totalorder %s293, %s307
      %p309 = scmp.eq.s32.totalorder %s31, 0
      %p310 = por %p308, %p309
      %s312 = sadd.s32 %s311, 1
      %p315 = scmp.eq.s32.totalorder %s25, 1
      %p316 = scmp.ne.s32.totalorder %s311, %s313
      %p317 = scmp.eq.s32.totalorder %s25, 0
      %p318 = por %p316, %p317
      %p319 = scmp.ne.s32.totalorder %s311, %s313
      %p320 = scmp.eq.s32.totalorder %s30, 1
      %p321 = por %p319, %p320
      %p322 = scmp.ne.s32.totalorder %s313, %s314
      %p323 = scmp.eq.s32.totalorder %s30, 0
      %p324 = por %p322, %p323
      %p325 = scmp.ne.s32.totalorder %s313, %s314
      %p326 = scmp.eq.s32.totalorder %s31, 1
      %p327 = por %p325, %p326
      %p329 = scmp.ne.s32.totalorder %s314, %s328
      %p330 = scmp.eq.s32.totalorder %s31, 0
      %p331 = por %p329, %p330
      %s332 = ssub.s32 %s25, %s32
      %p333 = scmp.eq.s32.totalorder %s332, 0
      %s335 = sadd.s32 %s334, 1
      %s336 = scalar_select %p333, %s334, %s335
      %p339 = pneg %p333
      %p340 = scmp.eq.s32.totalorder %s25, 1
      %p341 = por %p339, %p340
      %p342 = scmp.ne.s32.totalorder %s334, %s337
      %p343 = scmp.eq.s32.totalorder %s25, 0
      %p344 = por %p342, %p343
      %p345 = scmp.ne.s32.totalorder %s334, %s337
      %p346 = scmp.eq.s32.totalorder %s30, 1
      %p347 = por %p345, %p346
      %p348 = scmp.ne.s32.totalorder %s337, %s338
      %p349 = scmp.eq.s32.totalorder %s30, 0
      %p350 = por %p348, %p349
      %p351 = scmp.ne.s32.totalorder %s337, %s338
      %p352 = scmp.eq.s32.totalorder %s31, 1
      %p353 = por %p351, %p352
      %p355 = scmp.ne.s32.totalorder %s338, %s354
      %p356 = scmp.eq.s32.totalorder %s31, 0
      %p357 = por %p355, %p356
      %s359 = sadd.s32 %s358, 1
      %p362 = scmp.eq.s32.totalorder %s25, 1
      %p363 = scmp.ne.s32.totalorder %s358, %s360
      %p364 = scmp.eq.s32.totalorder %s25, 0
      %p365 = por %p363, %p364
      %p366 = scmp.ne.s32.totalorder %s358, %s360
      %p367 = scmp.eq.s32.totalorder %s30, 1
      %p368 = por %p366, %p367
      %p369 = scmp.ne.s32.totalorder %s360, %s361
      %p370 = scmp.eq.s32.totalorder %s30, 0
      %p371 = por %p369, %p370
      %p372 = scmp.ne.s32.totalorder %s360, %s361
      %p373 = scmp.eq.s32.totalorder %s31, 1
      %p374 = por %p372, %p373
      %p376 = scmp.ne.s32.totalorder %s361, %s375
      %p377 = scmp.eq.s32.totalorder %s31, 0
      %p378 = por %p376, %p377
      %p379 = scmp.le.s32.totalorder 1, %s25
      %p380 = scmp.lt.s32.totalorder %s25, 3
      %p381 = pnand %p379, %p380
      %p382 = pneg %p381
      // Predicated region
      $region9: #{mamba_block.1} parent=5 // pred_check
        _
      $region10: #{mamba_block.1} parent=5 // pred_check_branch
        %384 = sbr.rel (%p381) target = $region12
      $region11: #{mamba_block.1} parent=5 // pred_region
        %s385 = ssub.s32 %s25, 1
        // Predicated region
        $region13: #{mamba_block.1} parent=11 // pred_check
          %p386 = pneg %p72
        $region14: #{mamba_block.1} parent=11 // pred_check_branch
          %388 = sbr.rel (%p386) target = $region16
        $region15: #{mamba_block.1} parent=11 // pred_region
          _
        $region16: #{mamba_block.1} parent=11 // pred_fallthru
          _
        // Predicated region
        $region17: #{mamba_block.1} parent=11 // pred_check
          %p389 = pneg %p93
        $region18: #{mamba_block.1} parent=11 // pred_check_branch
          %391 = sbr.rel (%p389) target = $region20
        $region19: #{mamba_block.1} parent=11 // pred_region
          _
        $region20: #{mamba_block.1} parent=11 // pred_fallthru
          _
        // Predicated region
        $region21: #{mamba_block.1} parent=11 // pred_check
          %p392 = pneg %p114
        $region22: #{mamba_block.1} parent=11 // pred_check_branch
          %394 = sbr.rel (%p392) target = $region24
        $region23: #{mamba_block.1} parent=11 // pred_region
          %s396 = ssub.s32 2048, 2048
          %397 = vsyncadd [#allocation5], %s396
          %s398 = sshll.u32 [#allocation4], 4
          %s399 = int_to_ptr.vmem [resolvable:$true] %s398
          %404 = dma.hbm_to_vmem [thread:$0]  %s3, 2048, %s399, [#allocation5], 128, 128, 8
        $region24: #{mamba_block.1} parent=11 // pred_fallthru
          _
        // Predicated region
        $region25: #{mamba_block.1} parent=11 // pred_check
          %p405 = pneg %p135
        $region26: #{mamba_block.1} parent=11 // pred_check_branch
          %407 = sbr.rel (%p405) target = $region28
        $region27: #{mamba_block.1} parent=11 // pred_region
          %s409 = ssub.s32 2048, 2048
          %410 = vsyncadd [#allocation8], %s409
          %s411 = sshll.u32 [#allocation7], 4
          %s412 = int_to_ptr.vmem [resolvable:$true] %s411
          %417 = dma.hbm_to_vmem [thread:$0]  %s4, 2048, %s412, [#allocation8], 128, 128, 8
        $region28: #{mamba_block.1} parent=11 // pred_fallthru
          _
        // Predicated region
        $region29: #{mamba_block.1} parent=11 // pred_check
          %p418 = pneg %p156
        $region30: #{mamba_block.1} parent=11 // pred_check_branch
          %420 = sbr.rel (%p418) target = $region32
        $region31: #{mamba_block.1} parent=11 // pred_region
          _
        $region32: #{mamba_block.1} parent=11 // pred_fallthru
          _
        // Predicated region
        $region33: #{mamba_block.1} parent=11 // pred_check
          %p421 = pneg %p177
        $region34: #{mamba_block.1} parent=11 // pred_check_branch
          %423 = sbr.rel (%p421) target = $region36
        $region35: #{mamba_block.1} parent=11 // pred_region
          _
        $region36: #{mamba_block.1} parent=11 // pred_fallthru
          _
        // Predicated region
        $region37: #{mamba_block.1} parent=11 // pred_check
          %p424 = pneg %p198
        $region38: #{mamba_block.1} parent=11 // pred_check_branch
          %426 = sbr.rel (%p424) target = $region40
        $region39: #{mamba_block.1} parent=11 // pred_region
          _
        $region40: #{mamba_block.1} parent=11 // pred_fallthru
          _
        // Predicated region
        $region41: #{mamba_block.1} parent=11 // pred_check
          %p427 = pneg %p219
        $region42: #{mamba_block.1} parent=11 // pred_check_branch
          %429 = sbr.rel (%p427) target = $region44
        $region43: #{mamba_block.1} parent=11 // pred_region
          _
        $region44: #{mamba_block.1} parent=11 // pred_fallthru
          _
        // Predicated region
        $region45: #{mamba_block.1} parent=11 // pred_check
          %p430 = pneg %p240
        $region46: #{mamba_block.1} parent=11 // pred_check_branch
          %432 = sbr.rel (%p430) target = $region48
        $region47: #{mamba_block.1} parent=11 // pred_region
          _
        $region48: #{mamba_block.1} parent=11 // pred_fallthru
          _
        // Predicated region
        $region49: #{mamba_block.1} parent=11 // pred_check
          %p433 = pneg %p261
        $region50: #{mamba_block.1} parent=11 // pred_check_branch
          %435 = sbr.rel (%p433) target = $region52
        $region51: #{mamba_block.1} parent=11 // pred_region
          _
        $region52: #{mamba_block.1} parent=11 // pred_fallthru
          _
        // Predicated region
        $region53: #{mamba_block.1} parent=11 // pred_check
          %p436 = pneg %p282
        $region54: #{mamba_block.1} parent=11 // pred_check_branch
          %438 = sbr.rel (%p436) target = $region56
        $region55: #{mamba_block.1} parent=11 // pred_region
          _
        $region56: #{mamba_block.1} parent=11 // pred_fallthru
          _
        // Predicated region
        $region57: #{mamba_block.1} parent=11 // pred_check
          %p439 = pneg %p303
        $region58: #{mamba_block.1} parent=11 // pred_check_branch
          %441 = sbr.rel (%p439) target = $region60
        $region59: #{mamba_block.1} parent=11 // pred_region
          %s443 = ssub.s32 4096, 4096
          %444 = vsyncadd [#allocation8], %s443
          %s445 = sshll.u32 [#allocation9], 4
          %s446 = int_to_ptr.vmem [resolvable:$true] %s445
          %451 = dma.hbm_to_vmem [thread:$0]  %s12, 4096, %s446, [#allocation8], 128, 128, 8
        $region60: #{mamba_block.1} parent=11 // pred_fallthru
          _
        // Predicated region
        $region61: #{mamba_block.1} parent=11 // pred_check
          %p452 = pneg %p324
        $region62: #{mamba_block.1} parent=11 // pred_check_branch
          %454 = sbr.rel (%p452) target = $region64
        $region63: #{mamba_block.1} parent=11 // pred_region
          _
        $region64: #{mamba_block.1} parent=11 // pred_fallthru
          _
      $region12: #{mamba_block.1} parent=5 // pred_fallthru
        _
      %p455 = scmp.lt.s32.totalorder %s25, 2
      // Predicated region
      $region65: #{mamba_block.1} parent=5 // pred_check
        %p456 = pneg %p455
      $region66: #{mamba_block.1} parent=5 // pred_check_branch
        %458 = sbr.rel (%p456) target = $region68
      $region67: #{mamba_block.1} parent=5 // pred_region
        // Predicated region
        $region69: #{mamba_block.1} parent=67 // pred_check
          %p459 = pneg %p45
        $region70: #{mamba_block.1} parent=67 // pred_check_branch
          %461 = sbr.rel (%p459) target = $region72
        $region71: #{mamba_block.1} parent=67 // pred_region
          %s462 = smul.u32 8, %s25
          %p463 = scmp.lt.s32.totalorder %s462, 15
          %s464 = scalar_select %p463, %s462, 15
          %s465 = smul.addr %s464, 8
          %s466 = scalar_lea.vmem %s0, %s465
          %s467 = smul.u32 8, %s25
        $region72: #{mamba_block.1} parent=67 // pred_fallthru
          _
      $region68: #{mamba_block.1} parent=5 // pred_fallthru
        _
      %p468 = scmp.le.s32.totalorder 1, %s25
      %p469 = scmp.lt.s32.totalorder %s25, 3
      %p470 = pnand %p468, %p469
      %p471 = pneg %p470
      // Predicated region
      $region73: #{mamba_block.1} parent=5 // pred_check
        _
      $region74: #{mamba_block.1} parent=5 // pred_check_branch
        %473 = sbr.rel (%p470) target = $region76
      $region75: #{mamba_block.1} parent=5 // pred_region
        %s474 = ssub.s32 %s25, 1
        // Predicated region
        $region77: #{mamba_block.1} parent=75 // pred_check
          %p475 = pneg %p114
        $region78: #{mamba_block.1} parent=75 // pred_check_branch
          %477 = sbr.rel (%p475) target = $region80
        $region79: #{mamba_block.1} parent=75 // pred_region
          %478 = dma.done [#allocation5], 2048
        $region80: #{mamba_block.1} parent=75 // pred_fallthru
          _
        // Predicated region
        $region81: #{mamba_block.1} parent=75 // pred_check
          %p479 = pneg %p135
        $region82: #{mamba_block.1} parent=75 // pred_check_branch
          %481 = sbr.rel (%p479) target = $region84
        $region83: #{mamba_block.1} parent=75 // pred_region
          %482 = dma.done [#allocation8], 2048
        $region84: #{mamba_block.1} parent=75 // pred_fallthru
          _
        // Predicated region
        $region85: #{mamba_block.1} parent=75 // pred_check
          %p483 = pneg %p303
        $region86: #{mamba_block.1} parent=75 // pred_check_branch
          %485 = sbr.rel (%p483) target = $region88
        $region87: #{mamba_block.1} parent=75 // pred_region
          %486 = dma.done [#allocation8], 4096
        $region88: #{mamba_block.1} parent=75 // pred_fallthru
          _
        %s487 = smul.u32 8, %s30
        %p488 = scmp.lt.s32.totalorder %s487, 15
        %s489 = scalar_select %p488, %s487, 15
        %s490 = smul.addr %s489, 8
        %s491 = scalar_lea.vmem %s0, %s490
        %p492 = pneg %p51
        %p493 = pneg %p48
        %p494 = pneg %p72
        %p495 = pneg %p69
        %p496 = pneg %p93
        %p497 = pneg %p90
        %p498 = pneg %p114
        %p499 = pneg %p111
        %p500 = pneg %p135
        %p501 = pneg %p132
        %p502 = pneg %p156
        %p503 = pneg %p153
        %p504 = pneg %p177
        %p505 = pneg %p174
        %p506 = pneg %p198
        %p507 = pneg %p195
        %p508 = pneg %p219
        %p509 = pneg %p216
        %p510 = pneg %p240
        %p511 = pneg %p237
        %p512 = pneg %p261
        %p513 = pneg %p258
        %p514 = pneg %p282
        %p515 = pneg %p279
        %p516 = pneg %p303
        %p517 = pneg %p300
        %p518 = pneg %p324
        %p519 = pneg %p321
        %p520 = pneg %p350
        %p521 = pneg %p347
        %s522 = smul.u32 8, %s30
        %p523 = scmp.lt.s32.totalorder %s522, 15
        %s524 = scalar_select %p523, %s522, 15
        %s525 = smul.addr %s524, 8
        %s526 = scalar_lea.vmem %s14, %s525
        %p527 = pneg %p371
        %p528 = pneg %p368
        %s529 = smul.u32 8, %s30
        %p530 = scmp.lt.s32.totalorder %s529, 15
        %s531 = scalar_select %p530, %s529, 15
        %s532 = smul.addr %s531, 8
        %s533 = scalar_lea.vmem %s0, %s532
        %s534 = smul.u32 8, %s30
        %s535 = smul.u32 8, %s30
        %p536 = scmp.lt.s32.totalorder %s535, 15
        %s537 = scalar_select %p536, %s535, 15
        %s538 = smul.addr %s537, 8
        %s539 = scalar_lea.vmem %s14, %s538
        %s540 = smul.u32 8, %s30
        %v542 = vld [vmem:[%s2] sm:$0x1]
        %v543 = vld [vmem:[%s5] sm:$0x1]
        %v544 = vld [vmem:[%s6] sm:$0x1]
        %v545 = vld [vmem:[%s7] sm:$0x1]
        %v546 = vld [vmem:[%s8] sm:$0x1]
        %v547 = vld [vmem:[%s9] sm:$0x1]
        %v548 = vld [vmem:[%s11] sm:$0x3]
        %v549 = vld [vmem:[%s13] sm:$0x1]
        %v550 = vld [vmem:[#allocation4] sm:$0xff]
        %v551 = vld [vmem:[#allocation4 + $0x8] sm:$0xff]
        %v552 = vld [vmem:[#allocation4 + $0x10] sm:$0xff]
        %v553 = vld [vmem:[#allocation4 + $0x18] sm:$0xff]
        %v554 = vld [vmem:[#allocation4 + $0x20] sm:$0xff]
        %v555 = vld [vmem:[#allocation4 + $0x28] sm:$0xff]
        %v556 = vld [vmem:[#allocation4 + $0x30] sm:$0xff]
        %v557 = vld [vmem:[#allocation4 + $0x38] sm:$0xff]
        %v558 = vld [vmem:[#allocation4 + $0x40] sm:$0xff]
        %v559 = vld [vmem:[#allocation4 + $0x48] sm:$0xff]
        %v560 = vld [vmem:[#allocation4 + $0x50] sm:$0xff]
        %v561 = vld [vmem:[#allocation4 + $0x58] sm:$0xff]
        %v562 = vld [vmem:[#allocation4 + $0x60] sm:$0xff]
        %v563 = vld [vmem:[#allocation4 + $0x68] sm:$0xff]
        %v564 = vld [vmem:[#allocation4 + $0x70] sm:$0xff]
        %v565 = vld [vmem:[#allocation4 + $0x78] sm:$0xff]
        %v566 = vpack.c.bf16 %v551, %v550
        %v567 = vpack.c.bf16 %v553, %v552
        %v568 = vpack.c.bf16 %v555, %v554
        %v569 = vpack.c.bf16 %v557, %v556
        %v570 = vpack.c.bf16 %v559, %v558
        %v571 = vpack.c.bf16 %v561, %v560
        %v572 = vpack.c.bf16 %v563, %v562
        %v573 = vpack.c.bf16 %v565, %v564
        %v574 = vld [vmem:[#allocation7] sm:$0xff]
        %v575 = vld [vmem:[#allocation7 + $0x8] sm:$0xff]
        %v576 = vld [vmem:[#allocation7 + $0x10] sm:$0xff]
        %v577 = vld [vmem:[#allocation7 + $0x18] sm:$0xff]
        %v578 = vld [vmem:[#allocation7 + $0x20] sm:$0xff]
        %v579 = vld [vmem:[#allocation7 + $0x28] sm:$0xff]
        %v580 = vld [vmem:[#allocation7 + $0x30] sm:$0xff]
        %v581 = vld [vmem:[#allocation7 + $0x38] sm:$0xff]
        %v582 = vld [vmem:[#allocation7 + $0x40] sm:$0xff]
        %v583 = vld [vmem:[#allocation7 + $0x48] sm:$0xff]
        %v584 = vld [vmem:[#allocation7 + $0x50] sm:$0xff]
        %v585 = vld [vmem:[#allocation7 + $0x58] sm:$0xff]
        %v586 = vld [vmem:[#allocation7 + $0x60] sm:$0xff]
        %v587 = vld [vmem:[#allocation7 + $0x68] sm:$0xff]
        %v588 = vld [vmem:[#allocation7 + $0x70] sm:$0xff]
        %v589 = vld [vmem:[#allocation7 + $0x78] sm:$0xff]
        %v590 = vpack.c.bf16 %v575, %v574
        %v591 = vpack.c.bf16 %v577, %v576
        %v592 = vpack.c.bf16 %v579, %v578
        %v593 = vpack.c.bf16 %v581, %v580
        %v594 = vpack.c.bf16 %v583, %v582
        %v595 = vpack.c.bf16 %v585, %v584
        %v596 = vpack.c.bf16 %v587, %v586
        %v597 = vpack.c.bf16 %v589, %v588
        %v598 = vld [vmem:[%s10] sm:$0xff]
        %v599 = vld [vmem:[%s10 + $0x8] sm:$0xff]
        %v600 = vld [vmem:[%s10 + $0x10] sm:$0xff]
        %v601 = vld [vmem:[%s10 + $0x18] sm:$0xff]
        %v602 = vld [vmem:[%s10 + $0x20] sm:$0xff]
        %v603 = vld [vmem:[%s10 + $0x28] sm:$0xff]
        %v604 = vld [vmem:[%s10 + $0x30] sm:$0xff]
        %v605 = vld [vmem:[%s10 + $0x38] sm:$0xff]
        %v606 = vld [vmem:[%s10 + $0x40] sm:$0xff]
        %v607 = vld [vmem:[%s10 + $0x48] sm:$0xff]
        %v608 = vld [vmem:[%s10 + $0x50] sm:$0xff]
        %v609 = vld [vmem:[%s10 + $0x58] sm:$0xff]
        %v610 = vld [vmem:[%s10 + $0x60] sm:$0xff]
        %v611 = vld [vmem:[%s10 + $0x68] sm:$0xff]
        %v612 = vld [vmem:[%s10 + $0x70] sm:$0xff]
        %v613 = vld [vmem:[%s10 + $0x78] sm:$0xff]
        %v614 = vld [vmem:[%s10 + $0x80] sm:$0xff]
        %v615 = vld [vmem:[%s10 + $0x88] sm:$0xff]
        %v616 = vld [vmem:[%s10 + $0x90] sm:$0xff]
        %v617 = vld [vmem:[%s10 + $0x98] sm:$0xff]
        %v618 = vld [vmem:[%s10 + $0xa0] sm:$0xff]
        %v619 = vld [vmem:[%s10 + $0xa8] sm:$0xff]
        %v620 = vld [vmem:[%s10 + $0xb0] sm:$0xff]
        %v621 = vld [vmem:[%s10 + $0xb8] sm:$0xff]
        %v622 = vld [vmem:[%s10 + $0xc0] sm:$0xff]
        %v623 = vld [vmem:[%s10 + $0xc8] sm:$0xff]
        %v624 = vld [vmem:[%s10 + $0xd0] sm:$0xff]
        %v625 = vld [vmem:[%s10 + $0xd8] sm:$0xff]
        %v626 = vld [vmem:[%s10 + $0xe0] sm:$0xff]
        %v627 = vld [vmem:[%s10 + $0xe8] sm:$0xff]
        %v628 = vld [vmem:[%s10 + $0xf0] sm:$0xff]
        %v629 = vld [vmem:[%s10 + $0xf8] sm:$0xff]
        %v630 = vpack.c.bf16 %v600, %v598
        %v631 = vpack.c.bf16 %v601, %v599
        %v632 = vpack.c.bf16 %v604, %v602
        %v633 = vpack.c.bf16 %v605, %v603
        %v634 = vpack.c.bf16 %v608, %v606
        %v635 = vpack.c.bf16 %v609, %v607
        %v636 = vpack.c.bf16 %v612, %v610
        %v637 = vpack.c.bf16 %v613, %v611
        %v638 = vpack.c.bf16 %v616, %v614
        %v639 = vpack.c.bf16 %v617, %v615
        %v640 = vpack.c.bf16 %v620, %v618
        %v641 = vpack.c.bf16 %v621, %v619
        %v642 = vpack.c.bf16 %v624, %v622
        %v643 = vpack.c.bf16 %v625, %v623
        %v644 = vpack.c.bf16 %v628, %v626
        %v645 = vpack.c.bf16 %v629, %v627
        %v646 = vld [vmem:[#allocation9] sm:$0xff]
        %v647 = vld [vmem:[#allocation9 + $0x8] sm:$0xff]
        %v648 = vld [vmem:[#allocation9 + $0x10] sm:$0xff]
        %v649 = vld [vmem:[#allocation9 + $0x18] sm:$0xff]
        %v650 = vld [vmem:[#allocation9 + $0x20] sm:$0xff]
        %v651 = vld [vmem:[#allocation9 + $0x28] sm:$0xff]
        %v652 = vld [vmem:[#allocation9 + $0x30] sm:$0xff]
        %v653 = vld [vmem:[#allocation9 + $0x38] sm:$0xff]
        %v654 = vld [vmem:[#allocation9 + $0x40] sm:$0xff]
        %v655 = vld [vmem:[#allocation9 + $0x48] sm:$0xff]
        %v656 = vld [vmem:[#allocation9 + $0x50] sm:$0xff]
        %v657 = vld [vmem:[#allocation9 + $0x58] sm:$0xff]
        %v658 = vld [vmem:[#allocation9 + $0x60] sm:$0xff]
        %v659 = vld [vmem:[#allocation9 + $0x68] sm:$0xff]
        %v660 = vld [vmem:[#allocation9 + $0x70] sm:$0xff]
        %v661 = vld [vmem:[#allocation9 + $0x78] sm:$0xff]
        %v662 = vld [vmem:[#allocation9 + $0x80] sm:$0xff]
        %v663 = vld [vmem:[#allocation9 + $0x88] sm:$0xff]
        %v664 = vld [vmem:[#allocation9 + $0x90] sm:$0xff]
        %v665 = vld [vmem:[#allocation9 + $0x98] sm:$0xff]
        %v666 = vld [vmem:[#allocation9 + $0xa0] sm:$0xff]
        %v667 = vld [vmem:[#allocation9 + $0xa8] sm:$0xff]
        %v668 = vld [vmem:[#allocation9 + $0xb0] sm:$0xff]
        %v669 = vld [vmem:[#allocation9 + $0xb8] sm:$0xff]
        %v670 = vld [vmem:[#allocation9 + $0xc0] sm:$0xff]
        %v671 = vld [vmem:[#allocation9 + $0xc8] sm:$0xff]
        %v672 = vld [vmem:[#allocation9 + $0xd0] sm:$0xff]
        %v673 = vld [vmem:[#allocation9 + $0xd8] sm:$0xff]
        %v674 = vld [vmem:[#allocation9 + $0xe0] sm:$0xff]
        %v675 = vld [vmem:[#allocation9 + $0xe8] sm:$0xff]
        %v676 = vld [vmem:[#allocation9 + $0xf0] sm:$0xff]
        %v677 = vld [vmem:[#allocation9 + $0xf8] sm:$0xff]
        %v678 = vpack.c.bf16 %v647, %v646
        %v679 = vpack.c.bf16 %v649, %v648
        %v680 = vpack.c.bf16 %v651, %v650
        %v681 = vpack.c.bf16 %v653, %v652
        %v682 = vpack.c.bf16 %v655, %v654
        %v683 = vpack.c.bf16 %v657, %v656
        %v684 = vpack.c.bf16 %v659, %v658
        %v685 = vpack.c.bf16 %v661, %v660
        %v686 = vpack.c.bf16 %v663, %v662
        %v687 = vpack.c.bf16 %v665, %v664
        %v688 = vpack.c.bf16 %v667, %v666
        %v689 = vpack.c.bf16 %v669, %v668
        %v690 = vpack.c.bf16 %v671, %v670
        %v691 = vpack.c.bf16 %v673, %v672
        %v692 = vpack.c.bf16 %v675, %v674
        %v693 = vpack.c.bf16 %v677, %v676
        %p694 = scmp.eq.s32.totalorder %s30, 0
        // Predicated region
        $region89: #{mamba_block.1} parent=75 // pred_check
          %p695 = pneg %p694
        $region90: #{mamba_block.1} parent=75 // pred_check_branch
          %697 = sbr.rel (%p695) target = $region92
        $region91: #{mamba_block.1} parent=75 // pred_region
          %v698 = vld [vmem:[%s1] sm:$0xff]
          %699 = vst [vmem:[#allocation3] sm:$0xff] %v698
        $region92: #{mamba_block.1} parent=75 // pred_fallthru
          _
        %v700 = vld [vmem:[%s533] sm:$0xff]
        %v701 = vld [vmem:[%s533 + $0x8] sm:$0xff]
        %v702 = vld [vmem:[%s533 + $0x10] sm:$0xff]
        %v703 = vld [vmem:[%s533 + $0x18] sm:$0xff]
        %v704 = vld [vmem:[%s533 + $0x20] sm:$0xff]
        %v705 = vld [vmem:[%s533 + $0x28] sm:$0xff]
        %v706 = vld [vmem:[%s533 + $0x30] sm:$0xff]
        %v707 = vld [vmem:[%s533 + $0x38] sm:$0xff]
        %708 = vadd.xlane.f32.xlu0 %v700
        %v709 = vpop.xlane.xlu0 %708
        %710 = vadd.xlane.f32.xlu0 %v701
        %v711 = vpop.xlane.xlu0 %710
        %712 = vadd.xlane.f32.xlu0 %v702
        %v713 = vpop.xlane.xlu0 %712
        %714 = vadd.xlane.f32.xlu0 %v703
        %v715 = vpop.xlane.xlu0 %714
        %716 = vadd.xlane.f32.xlu0 %v704
        %v717 = vpop.xlane.xlu0 %716
        %718 = vadd.xlane.f32.xlu0 %v705
        %v719 = vpop.xlane.xlu0 %718
        %720 = vadd.xlane.f32.xlu0 %v706
        %v721 = vpop.xlane.xlu0 %720
        %722 = vadd.xlane.f32.xlu0 %v707
        %v723 = vpop.xlane.xlu0 %722
        %v724 = vrcp.pop 128.0
        %v725 = vmul.f32 %v709, %v724
        %v726 = vmul.f32 %v711, %v724
        %v727 = vmul.f32 %v713, %v724
        %v728 = vmul.f32 %v715, %v724
        %v729 = vmul.f32 %v717, %v724
        %v730 = vmul.f32 %v719, %v724
        %v731 = vmul.f32 %v721, %v724
        %v732 = vmul.f32 %v723, %v724
        %v733 = vsub.f32 %v700, %v725
        %v734 = vsub.f32 %v701, %v726
        %v735 = vsub.f32 %v702, %v727
        %v736 = vsub.f32 %v703, %v728
        %v737 = vsub.f32 %v704, %v729
        %v738 = vsub.f32 %v705, %v730
        %v739 = vsub.f32 %v706, %v731
        %v740 = vsub.f32 %v707, %v732
        %v741 = vmul.f32 %v733, %v733
        %v742 = vmul.f32 %v734, %v734
        %v743 = vmul.f32 %v735, %v735
        %v744 = vmul.f32 %v736, %v736
        %v745 = vmul.f32 %v737, %v737
        %v746 = vmul.f32 %v738, %v738
        %v747 = vmul.f32 %v739, %v739
        %v748 = vmul.f32 %v740, %v740
        %749 = vadd.xlane.f32.xlu0 %v741
        %v750 = vpop.xlane.xlu0 %749
        %751 = vadd.xlane.f32.xlu0 %v742
        %v752 = vpop.xlane.xlu0 %751
        %753 = vadd.xlane.f32.xlu0 %v743
        %v754 = vpop.xlane.xlu0 %753
        %755 = vadd.xlane.f32.xlu0 %v744
        %v756 = vpop.xlane.xlu0 %755
        %757 = vadd.xlane.f32.xlu0 %v745
        %v758 = vpop.xlane.xlu0 %757
        %759 = vadd.xlane.f32.xlu0 %v746
        %v760 = vpop.xlane.xlu0 %759
        %761 = vadd.xlane.f32.xlu0 %v747
        %v762 = vpop.xlane.xlu0 %761
        %763 = vadd.xlane.f32.xlu0 %v748
        %v764 = vpop.xlane.xlu0 %763
        %v765 = vmul.f32 %v750, %v724
        %v766 = vmul.f32 %v752, %v724
        %v767 = vmul.f32 %v754, %v724
        %v768 = vmul.f32 %v756, %v724
        %v769 = vmul.f32 %v758, %v724
        %v770 = vmul.f32 %v760, %v724
        %v771 = vmul.f32 %v762, %v724
        %v772 = vmul.f32 %v764, %v724
        %v773 = vadd.f32 %v765, 1e-05
        %v774 = vadd.f32 %v766, 1e-05
        %v775 = vadd.f32 %v767, 1e-05
        %v776 = vadd.f32 %v768, 1e-05
        %v777 = vadd.f32 %v769, 1e-05
        %v778 = vadd.f32 %v770, 1e-05
        %v779 = vadd.f32 %v771, 1e-05
        %v780 = vadd.f32 %v772, 1e-05
        %v781 = vrsqrt.pop %v773
        %v782 = vrsqrt.pop %v774
        %v783 = vrsqrt.pop %v775
        %v784 = vrsqrt.pop %v776
        %v785 = vrsqrt.pop %v777
        %v786 = vrsqrt.pop %v778
        %v787 = vrsqrt.pop %v779
        %v788 = vrsqrt.pop %v780
        %v789 = vmul.f32 %v733, %v781
        %v790 = vmul.f32 %v734, %v782
        %v791 = vmul.f32 %v735, %v783
        %v792 = vmul.f32 %v736, %v784
        %v793 = vmul.f32 %v737, %v785
        %v794 = vmul.f32 %v738, %v786
        %v795 = vmul.f32 %v739, %v787
        %v796 = vmul.f32 %v740, %v788
        %v798 = vlaneseq
        %v799 = vshrl.u32 %v798, 7
        %v800 = vsub.s32 0, %v799
        %v801 = vrot.slane %v544, %v800
        %v803 = vmul.f32 %v789, %v801
        %v804 = vmul.f32 %v790, %v801
        %v805 = vmul.f32 %v791, %v801
        %v806 = vmul.f32 %v792, %v801
        %v807 = vmul.f32 %v793, %v801
        %v808 = vmul.f32 %v794, %v801
        %v809 = vmul.f32 %v795, %v801
        %v810 = vmul.f32 %v796, %v801
        %v812 = vlaneseq
        %v813 = vshrl.u32 %v812, 7
        %v814 = vsub.s32 0, %v813
        %v815 = vrot.slane %v545, %v814
        %v817 = vadd.f32 %v803, %v815
        %v818 = vadd.f32 %v804, %v815
        %v819 = vadd.f32 %v805, %v815
        %v820 = vadd.f32 %v806, %v815
        %v821 = vadd.f32 %v807, %v815
        %v822 = vadd.f32 %v808, %v815
        %v823 = vadd.f32 %v809, %v815
        %v824 = vadd.f32 %v810, %v815
        %v825 = vpack.c.bf16 %v818, %v817
        %v826 = vpack.c.bf16 %v820, %v819
        %v827 = vpack.c.bf16 %v822, %v821
        %v828 = vpack.c.bf16 %v824, %v823
        %829 = vmatprep.subr.bf16.mxu0 0
        %830 = vmatpush1.bf16.msra.mxu0 %v566
        %831 = vmatprep.subr.bf16.mxu0 0
        %832 = vmatpush1.bf16.msra.mxu0 %v567
        %833 = vmatprep.subr.bf16.mxu0 0
        %834 = vmatpush1.bf16.msra.mxu0 %v568
        %835 = vmatprep.subr.bf16.mxu0 0
        %836 = vmatpush1.bf16.msra.mxu0 %v569
        %837 = vmatprep.subr.bf16.mxu0 0
        %838 = vmatpush1.bf16.msra.mxu0 %v570
        %839 = vmatprep.subr.bf16.mxu0 0
        %840 = vmatpush1.bf16.msra.mxu0 %v571
        %841 = vmatprep.subr.bf16.mxu0 0
        %842 = vmatpush1.bf16.msra.mxu0 %v572
        %843 = vmatprep.subr.bf16.mxu0 0
        %844 = vmatpush1.bf16.msra.mxu0 %v573
        %845 = vmatprep.subr.bf16.mxu0 0
        %846 = vmatpush1.bf16.msra.mxu0 0
        %847 = vmatprep.subr.bf16.mxu0 0
        %848 = vmatpush1.bf16.msra.mxu0 0
        %849 = vmatprep.subr.bf16.mxu0 0
        %850 = vmatpush1.bf16.msra.mxu0 0
        %851 = vmatprep.subr.bf16.mxu0 0
        %852 = vmatpush1.bf16.msra.mxu0 0
        %853 = vmatprep.subr.bf16.mxu0 0
        %854 = vmatpush1.bf16.msra.mxu0 0
        %855 = vmatprep.subr.bf16.mxu0 0
        %856 = vmatpush1.bf16.msra.mxu0 0
        %857 = vmatprep.subr.bf16.mxu0 0
        %858 = vmatpush1.bf16.msra.mxu0 0
        %859 = vmatprep.subr.bf16.mxu0 0
        %860 = vmatpush1.bf16.msra.mxu0 0
        %861 = vmatprep.mubr.bf16.mxu0 0
        %862 = vmatmul.mubr.bf16.gmra.mrb[0].mxu0 %v825
        %v863 = vpop.f32.mrb[0].mxu0
        %v864 = vadd.f32 0.0, %v863
        %v865 = vpop.f32.mrb[0].mxu0
        %v866 = vpop.f32.mrb[0].mxu0
        %v867 = vadd.f32 0.0, %v866
        %v868 = vpop.f32.mrb[0].mxu0
        %869 = vmatprep.mubr.bf16.mxu0 0
        %870 = vmatmul.mubr.bf16.gmra.mrb[0].mxu0 %v826
        %v871 = vpop.f32.mrb[0].mxu0
        %v872 = vadd.f32 0.0, %v871
        %v873 = vpop.f32.mrb[0].mxu0
        %v874 = vpop.f32.mrb[0].mxu0
        %v875 = vadd.f32 0.0, %v874
        %v876 = vpop.f32.mrb[0].mxu0
        %877 = vmatprep.mubr.bf16.mxu0 0
        %878 = vmatmul.mubr.bf16.gmra.mrb[0].mxu0 %v827
        %v879 = vpop.f32.mrb[0].mxu0
        %v880 = vadd.f32 0.0, %v879
        %v881 = vpop.f32.mrb[0].mxu0
        %v882 = vpop.f32.mrb[0].mxu0
        %v883 = vadd.f32 0.0, %v882
        %v884 = vpop.f32.mrb[0].mxu0
        %885 = vmatprep.mubr.bf16.mxu0 0
        %886 = vmatmul.mubr.bf16.gmra.mrb[0].mxu0 %v828
        %v887 = vpop.f32.mrb[0].mxu0
        %v888 = vadd.f32 0.0, %v887
        %v889 = vpop.f32.mrb[0].mxu0
        %v890 = vpop.f32.mrb[0].mxu0
        %v891 = vadd.f32 0.0, %v890
        %v892 = vpop.f32.mrb[0].mxu0
        %893 = vdwg.mxu0
        %894 = vst [vmem:[#allocation2] sm:$0xff] %v864
        %895 = vst [vmem:[#allocation2 + $0x8] sm:$0xff] %v867
        %896 = vst [vmem:[#allocation2 + $0x10] sm:$0xff] %v872
        %897 = vst [vmem:[#allocation2 + $0x18] sm:$0xff] %v875
        %898 = vst [vmem:[#allocation2 + $0x20] sm:$0xff] %v880
        %899 = vst [vmem:[#allocation2 + $0x28] sm:$0xff] %v883
        %900 = vst [vmem:[#allocation2 + $0x30] sm:$0xff] %v888
        %901 = vst [vmem:[#allocation2 + $0x38] sm:$0xff] %v891
        %v902 = vld [vmem:[#allocation3] sm:$0xff]
        %v904 = vlaneseq
        %v905 = vshrl.u32 %v904, 7
        %v906 = vsub.s32 0, %v905
        %v907 = vrot.slane %v542, %v906
        %v909 = vmul.f32 %v907, %v902
        %v910 = vld [vmem:[#allocation2] sm:$0xff]
        %v911 = vadd.f32 %v909, %v910
        %912 = vst [vmem:[#allocation2] sm:$0xff] %v911
        %v913 = vmul.f32 %v907, %v911
        %s914 = scalar_lea.vmem [#allocation2], 8
        %v915 = vld [vmem:[%s914] sm:$0xff]
        %v916 = vadd.f32 %v913, %v915
        %917 = vst [vmem:[%s914] sm:$0xff] %v916
        %v918 = vmul.f32 %v907, %v916
        %s919 = scalar_lea.vmem [#allocation2], 16
        %v920 = vld [vmem:[%s919] sm:$0xff]
        %v921 = vadd.f32 %v918, %v920
        %922 = vst [vmem:[%s919] sm:$0xff] %v921
        %v923 = vmul.f32 %v907, %v921
        %s924 = scalar_lea.vmem [#allocation2], 24
        %v925 = vld [vmem:[%s924] sm:$0xff]
        %v926 = vadd.f32 %v923, %v925
        %927 = vst [vmem:[%s924] sm:$0xff] %v926
        %v928 = vmul.f32 %v907, %v926
        %s929 = scalar_lea.vmem [#allocation2], 32
        %v930 = vld [vmem:[%s929] sm:$0xff]
        %v931 = vadd.f32 %v928, %v930
        %932 = vst [vmem:[%s929] sm:$0xff] %v931
        %v933 = vmul.f32 %v907, %v931
        %s934 = scalar_lea.vmem [#allocation2], 40
        %v935 = vld [vmem:[%s934] sm:$0xff]
        %v936 = vadd.f32 %v933, %v935
        %937 = vst [vmem:[%s934] sm:$0xff] %v936
        %v938 = vmul.f32 %v907, %v936
        %s939 = scalar_lea.vmem [#allocation2], 48
        %v940 = vld [vmem:[%s939] sm:$0xff]
        %v941 = vadd.f32 %v938, %v940
        %942 = vst [vmem:[%s939] sm:$0xff] %v941
        %v943 = vmul.f32 %v907, %v941
        %s944 = scalar_lea.vmem [#allocation2], 56
        %v945 = vld [vmem:[%s944] sm:$0xff]
        %v946 = vadd.f32 %v943, %v945
        %947 = vst [vmem:[%s944] sm:$0xff] %v946
        %948 = vst [vmem:[#allocation3] sm:$0xff] %v946
        %949 = vst [vmem:[#allocation10] sm:$0xff] %v946
        %v950 = vld [vmem:[#allocation2] sm:$0xff]
        %v951 = vld [vmem:[#allocation2 + $0x8] sm:$0xff]
        %v952 = vld [vmem:[#allocation2 + $0x10] sm:$0xff]
        %v953 = vld [vmem:[#allocation2 + $0x18] sm:$0xff]
        %v954 = vld [vmem:[#allocation2 + $0x20] sm:$0xff]
        %v955 = vld [vmem:[#allocation2 + $0x28] sm:$0xff]
        %v956 = vld [vmem:[#allocation2 + $0x30] sm:$0xff]
        %v957 = vld [vmem:[#allocation2 + $0x38] sm:$0xff]
        %v958 = vpack.c.bf16 %v951, %v950
        %v959 = vpack.c.bf16 %v953, %v952
        %v960 = vpack.c.bf16 %v955, %v954
        %v961 = vpack.c.bf16 %v957, %v956
        %v963 = vlaneseq
        %v964 = vshrl.u32 %v963, 7
        %v965 = vsub.s32 0, %v964
        %v966 = vrot.slane %v543, %v965
        %v968 = vmul.f32 %v817, %v966
        %v969 = vmul.f32 %v818, %v966
        %v970 = vmul.f32 %v819, %v966
        %v971 = vmul.f32 %v820, %v966
        %v972 = vmul.f32 %v821, %v966
        %v973 = vmul.f32 %v822, %v966
        %v974 = vmul.f32 %v823, %v966
        %v975 = vmul.f32 %v824, %v966
        %976 = vmatprep.subr.bf16.mxu0 0
        %977 = vmatpush1.bf16.msra.mxu0 %v590
        %978 = vmatprep.subr.bf16.mxu0 0
        %979 = vmatpush1.bf16.msra.mxu0 %v591
        %980 = vmatprep.subr.bf16.mxu0 0
        %981 = vmatpush1.bf16.msra.mxu0 %v592
        %982 = vmatprep.subr.bf16.mxu0 0
        %983 = vmatpush1.bf16.msra.mxu0 %v593
        %984 = vmatprep.subr.bf16.mxu0 0
        %985 = vmatpush1.bf16.msra.mxu0 %v594
        %986 = vmatprep.subr.bf16.mxu0 0
        %987 = vmatpush1.bf16.msra.mxu0 %v595
        %988 = vmatprep.subr.bf16.mxu0 0
        %989 = vmatpush1.bf16.msra.mxu0 %v596
        %990 = vmatprep.subr.bf16.mxu0 0
        %991 = vmatpush1.bf16.msra.mxu0 %v597
        %992 = vmatprep.subr.bf16.mxu0 0
        %993 = vmatpush1.bf16.msra.mxu0 0
        %994 = vmatprep.subr.bf16.mxu0 0
        %995 = vmatpush1.bf16.msra.mxu0 0
        %996 = vmatprep.subr.bf16.mxu0 0
        %997 = vmatpush1.bf16.msra.mxu0 0
        %998 = vmatprep.subr.bf16.mxu0 0
        %999 = vmatpush1.bf16.msra.mxu0 0
        %1000 = vmatprep.subr.bf16.mxu0 0
        %1001 = vmatpush1.bf16.msra.mxu0 0
        %1002 = vmatprep.subr.bf16.mxu0 0
        %1003 = vmatpush1.bf16.msra.mxu0 0
        %1004 = vmatprep.subr.bf16.mxu0 0
        %1005 = vmatpush1.bf16.msra.mxu0 0
        %1006 = vmatprep.subr.bf16.mxu0 0
        %1007 = vmatpush1.bf16.msra.mxu0 0
        %1008 = vmatprep.mubr.bf16.mxu0 0
        %1009 = vmatmul.mubr.bf16.gmra.mrb[0].mxu0 %v958
        %v1010 = vpop.f32.mrb[0].mxu0
        %v1011 = vadd.f32 %v968, %v1010
        %v1012 = vpop.f32.mrb[0].mxu0
        %v1013 = vpop.f32.mrb[0].mxu0
        %v1014 = vadd.f32 %v969, %v1013
        %v1015 = vpop.f32.mrb[0].mxu0
        %1016 = vmatprep.mubr.bf16.mxu0 0
        %1017 = vmatmul.mubr.bf16.gmra.mrb[0].mxu0 %v959
        %v1018 = vpop.f32.mrb[0].mxu0
        %v1019 = vadd.f32 %v970, %v1018
        %v1020 = vpop.f32.mrb[0].mxu0
        %v1021 = vpop.f32.mrb[0].mxu0
        %v1022 = vadd.f32 %v971, %v1021
        %v1023 = vpop.f32.mrb[0].mxu0
        %1024 = vmatprep.mubr.bf16.mxu0 0
        %1025 = vmatmul.mubr.bf16.gmra.mrb[0].mxu0 %v960
        %v1026 = vpop.f32.mrb[0].mxu0
        %v1027 = vadd.f32 %v972, %v1026
        %v1028 = vpop.f32.mrb[0].mxu0
        %v1029 = vpop.f32.mrb[0].mxu0
        %v1030 = vadd.f32 %v973, %v1029
        %v1031 = vpop.f32.mrb[0].mxu0
        %1032 = vmatprep.mubr.bf16.mxu0 0
        %1033 = vmatmul.mubr.bf16.gmra.mrb[0].mxu0 %v961
        %v1034 = vpop.f32.mrb[0].mxu0
        %v1035 = vadd.f32 %v974, %v1034
        %v1036 = vpop.f32.mrb[0].mxu0
        %v1037 = vpop.f32.mrb[0].mxu0
        %v1038 = vadd.f32 %v975, %v1037
        %v1039 = vpop.f32.mrb[0].mxu0
        %1040 = vdwg.mxu0
        %v1041 = vmul.f32 %v1011, 0.5
        %v1042 = vmul.f32 %v1014, 0.5
        %v1043 = vmul.f32 %v1019, 0.5
        %v1044 = vmul.f32 %v1022, 0.5
        %v1045 = vmul.f32 %v1027, 0.5
        %v1046 = vmul.f32 %v1030, 0.5
        %v1047 = vmul.f32 %v1035, 0.5
        %v1048 = vmul.f32 %v1038, 0.5
        %v1049 = vmul.f32 %v1011, 0.044715
        %v1050 = vmul.f32 %v1014, 0.044715
        %v1051 = vmul.f32 %v1019, 0.044715
        %v1052 = vmul.f32 %v1022, 0.044715
        %v1053 = vmul.f32 %v1027, 0.044715
        %v1054 = vmul.f32 %v1030, 0.044715
        %v1055 = vmul.f32 %v1035, 0.044715
        %v1056 = vmul.f32 %v1038, 0.044715
        %v1057 = vmul.f32 %v1049, %v1011
        %v1058 = vmul.f32 %v1050, %v1014
        %v1059 = vmul.f32 %v1051, %v1019
        %v1060 = vmul.f32 %v1052, %v1022
        %v1061 = vmul.f32 %v1053, %v1027
        %v1062 = vmul.f32 %v1054, %v1030
        %v1063 = vmul.f32 %v1055, %v1035
        %v1064 = vmul.f32 %v1056, %v1038
        %v1065 = vmul.f32 %v1057, %v1011
        %v1066 = vmul.f32 %v1058, %v1014
        %v1067 = vmul.f32 %v1059, %v1019
        %v1068 = vmul.f32 %v1060, %v1022
        %v1069 = vmul.f32 %v1061, %v1027
        %v1070 = vmul.f32 %v1062, %v1030
        %v1071 = vmul.f32 %v1063, %v1035
        %v1072 = vmul.f32 %v1064, %v1038
        %v1073 = vadd.f32 %v1011, %v1065
        %v1074 = vadd.f32 %v1014, %v1066
        %v1075 = vadd.f32 %v1019, %v1067
        %v1076 = vadd.f32 %v1022, %v1068
        %v1077 = vadd.f32 %v1027, %v1069
        %v1078 = vadd.f32 %v1030, %v1070
        %v1079 = vadd.f32 %v1035, %v1071
        %v1080 = vadd.f32 %v1038, %v1072
        %v1081 = vmul.f32 %v1073, 0.7978846
        %v1082 = vmul.f32 %v1074, 0.7978846
        %v1083 = vmul.f32 %v1075, 0.7978846
        %v1084 = vmul.f32 %v1076, 0.7978846
        %v1085 = vmul.f32 %v1077, 0.7978846
        %v1086 = vmul.f32 %v1078, 0.7978846
        %v1087 = vmul.f32 %v1079, 0.7978846
        %v1088 = vmul.f32 %v1080, 0.7978846
        %v1089 = vtanh.pop %v1081
        %v1090 = vtanh.pop %v1082
        %v1091 = vtanh.pop %v1083
        %v1092 = vtanh.pop %v1084
        %v1093 = vtanh.pop %v1085
        %v1094 = vtanh.pop %v1086
        %v1095 = vtanh.pop %v1087
        %v1096 = vtanh.pop %v1088
        %v1097 = vadd.f32 %v1089, 1.0
        %v1098 = vadd.f32 %v1090, 1.0
        %v1099 = vadd.f32 %v1091, 1.0
        %v1100 = vadd.f32 %v1092, 1.0
        %v1101 = vadd.f32 %v1093, 1.0
        %v1102 = vadd.f32 %v1094, 1.0
        %v1103 = vadd.f32 %v1095, 1.0
        %v1104 = vadd.f32 %v1096, 1.0
        %v1105 = vmul.f32 %v1041, %v1097
        %v1106 = vmul.f32 %v1042, %v1098
        %v1107 = vmul.f32 %v1043, %v1099
        %v1108 = vmul.f32 %v1044, %v1100
        %v1109 = vmul.f32 %v1045, %v1101
        %v1110 = vmul.f32 %v1046, %v1102
        %v1111 = vmul.f32 %v1047, %v1103
        %v1112 = vmul.f32 %v1048, %v1104
        %v1113 = vadd.f32 %v700, %v1105
        %v1114 = vadd.f32 %v701, %v1106
        %v1115 = vadd.f32 %v702, %v1107
        %v1116 = vadd.f32 %v703, %v1108
        %v1117 = vadd.f32 %v704, %v1109
        %v1118 = vadd.f32 %v705, %v1110
        %v1119 = vadd.f32 %v706, %v1111
        %v1120 = vadd.f32 %v707, %v1112
        %1121 = vadd.xlane.f32.xlu0 %v1113
        %v1122 = vpop.xlane.xlu0 %1121
        %1123 = vadd.xlane.f32.xlu0 %v1114
        %v1124 = vpop.xlane.xlu0 %1123
        %1125 = vadd.xlane.f32.xlu0 %v1115
        %v1126 = vpop.xlane.xlu0 %1125
        %1127 = vadd.xlane.f32.xlu0 %v1116
        %v1128 = vpop.xlane.xlu0 %1127
        %1129 = vadd.xlane.f32.xlu0 %v1117
        %v1130 = vpop.xlane.xlu0 %1129
        %1131 = vadd.xlane.f32.xlu0 %v1118
        %v1132 = vpop.xlane.xlu0 %1131
        %1133 = vadd.xlane.f32.xlu0 %v1119
        %v1134 = vpop.xlane.xlu0 %1133
        %1135 = vadd.xlane.f32.xlu0 %v1120
        %v1136 = vpop.xlane.xlu0 %1135
        %v1137 = vmul.f32 %v1122, %v724
        %v1138 = vmul.f32 %v1124, %v724
        %v1139 = vmul.f32 %v1126, %v724
        %v1140 = vmul.f32 %v1128, %v724
        %v1141 = vmul.f32 %v1130, %v724
        %v1142 = vmul.f32 %v1132, %v724
        %v1143 = vmul.f32 %v1134, %v724
        %v1144 = vmul.f32 %v1136, %v724
        %v1145 = vsub.f32 %v1113, %v1137
        %v1146 = vsub.f32 %v1114, %v1138
        %v1147 = vsub.f32 %v1115, %v1139
        %v1148 = vsub.f32 %v1116, %v1140
        %v1149 = vsub.f32 %v1117, %v1141
        %v1150 = vsub.f32 %v1118, %v1142
        %v1151 = vsub.f32 %v1119, %v1143
        %v1152 = vsub.f32 %v1120, %v1144
        %v1153 = vmul.f32 %v1145, %v1145
        %v1154 = vmul.f32 %v1146, %v1146
        %v1155 = vmul.f32 %v1147, %v1147
        %v1156 = vmul.f32 %v1148, %v1148
        %v1157 = vmul.f32 %v1149, %v1149
        %v1158 = vmul.f32 %v1150, %v1150
        %v1159 = vmul.f32 %v1151, %v1151
        %v1160 = vmul.f32 %v1152, %v1152
        %1161 = vadd.xlane.f32.xlu0 %v1153
        %v1162 = vpop.xlane.xlu0 %1161
        %1163 = vadd.xlane.f32.xlu0 %v1154
        %v1164 = vpop.xlane.xlu0 %1163
        %1165 = vadd.xlane.f32.xlu0 %v1155
        %v1166 = vpop.xlane.xlu0 %1165
        %1167 = vadd.xlane.f32.xlu0 %v1156
        %v1168 = vpop.xlane.xlu0 %1167
        %1169 = vadd.xlane.f32.xlu0 %v1157
        %v1170 = vpop.xlane.xlu0 %1169
        %1171 = vadd.xlane.f32.xlu0 %v1158
        %v1172 = vpop.xlane.xlu0 %1171
        %1173 = vadd.xlane.f32.xlu0 %v1159
        %v1174 = vpop.xlane.xlu0 %1173
        %1175 = vadd.xlane.f32.xlu0 %v1160
        %v1176 = vpop.xlane.xlu0 %1175
        %v1177 = vmul.f32 %v1162, %v724
        %v1178 = vmul.f32 %v1164, %v724
        %v1179 = vmul.f32 %v1166, %v724
        %v1180 = vmul.f32 %v1168, %v724
        %v1181 = vmul.f32 %v1170, %v724
        %v1182 = vmul.f32 %v1172, %v724
        %v1183 = vmul.f32 %v1174, %v724
        %v1184 = vmul.f32 %v1176, %v724
        %v1185 = vadd.f32 %v1177, 1e-05
        %v1186 = vadd.f32 %v1178, 1e-05
        %v1187 = vadd.f32 %v1179, 1e-05
        %v1188 = vadd.f32 %v1180, 1e-05
        %v1189 = vadd.f32 %v1181, 1e-05
        %v1190 = vadd.f32 %v1182, 1e-05
        %v1191 = vadd.f32 %v1183, 1e-05
        %v1192 = vadd.f32 %v1184, 1e-05
        %v1193 = vrsqrt.pop %v1185
        %v1194 = vrsqrt.pop %v1186
        %v1195 = vrsqrt.pop %v1187
        %v1196 = vrsqrt.pop %v1188
        %v1197 = vrsqrt.pop %v1189
        %v1198 = vrsqrt.pop %v1190
        %v1199 = vrsqrt.pop %v1191
        %v1200 = vrsqrt.pop %v1192
        %v1201 = vmul.f32 %v1145, %v1193
        %v1202 = vmul.f32 %v1146, %v1194
        %v1203 = vmul.f32 %v1147, %v1195
        %v1204 = vmul.f32 %v1148, %v1196
        %v1205 = vmul.f32 %v1149, %v1197
        %v1206 = vmul.f32 %v1150, %v1198
        %v1207 = vmul.f32 %v1151, %v1199
        %v1208 = vmul.f32 %v1152, %v1200
        %v1210 = vlaneseq
        %v1211 = vshrl.u32 %v1210, 7
        %v1212 = vsub.s32 0, %v1211
        %v1213 = vrot.slane %v546, %v1212
        %v1215 = vmul.f32 %v1201, %v1213
        %v1216 = vmul.f32 %v1202, %v1213
        %v1217 = vmul.f32 %v1203, %v1213
        %v1218 = vmul.f32 %v1204, %v1213
        %v1219 = vmul.f32 %v1205, %v1213
        %v1220 = vmul.f32 %v1206, %v1213
        %v1221 = vmul.f32 %v1207, %v1213
        %v1222 = vmul.f32 %v1208, %v1213
        %v1224 = vlaneseq
        %v1225 = vshrl.u32 %v1224, 7
        %v1226 = vsub.s32 0, %v1225
        %v1227 = vrot.slane %v547, %v1226
        %v1229 = vadd.f32 %v1215, %v1227
        %v1230 = vadd.f32 %v1216, %v1227
        %v1231 = vadd.f32 %v1217, %v1227
        %v1232 = vadd.f32 %v1218, %v1227
        %v1233 = vadd.f32 %v1219, %v1227
        %v1234 = vadd.f32 %v1220, %v1227
        %v1235 = vadd.f32 %v1221, %v1227
        %v1236 = vadd.f32 %v1222, %v1227
        %v1237 = vpack.c.bf16 %v1230, %v1229
        %v1238 = vpack.c.bf16 %v1232, %v1231
        %v1239 = vpack.c.bf16 %v1234, %v1233
        %v1240 = vpack.c.bf16 %v1236, %v1235
        %v1242 = vlaneseq
        %v1243 = vshrl.u32 %v1242, 7
        %v1244 = vsub.s32 0, %v1243
        %v1245 = vrot.slane %v548, %v1244
        %v1246 = vlaneseq
        %v1247 = vshrl.u32 %v1246, 7
        %v1248 = vsub.s32 1, %v1247
        %v1249 = vrot.slane %v548, %v1248
        %1252 = vmatprep.subr.bf16.mxu0 %v631
        %1253 = vmatpush1.bf16.msra.mxu0 %v630
        %1254 = vmatprep.subr.bf16.mxu0 %v633
        %1255 = vmatpush1.bf16.msra.mxu0 %v632
        %1256 = vmatprep.subr.bf16.mxu0 %v635
        %1257 = vmatpush1.bf16.msra.mxu0 %v634
        %1258 = vmatprep.subr.bf16.mxu0 %v637
        %1259 = vmatpush1.bf16.msra.mxu0 %v636
        %1260 = vmatprep.subr.bf16.mxu0 %v639
        %1261 = vmatpush1.bf16.msra.mxu0 %v638
        %1262 = vmatprep.subr.bf16.mxu0 %v641
        %1263 = vmatpush1.bf16.msra.mxu0 %v640
        %1264 = vmatprep.subr.bf16.mxu0 %v643
        %1265 = vmatpush1.bf16.msra.mxu0 %v642
        %1266 = vmatprep.subr.bf16.mxu0 %v645
        %1267 = vmatpush1.bf16.msra.mxu0 %v644
        %1268 = vmatprep.subr.bf16.mxu0 0
        %1269 = vmatpush1.bf16.msra.mxu0 0
        %1270 = vmatprep.subr.bf16.mxu0 0
        %1271 = vmatpush1.bf16.msra.mxu0 0
        %1272 = vmatprep.subr.bf16.mxu0 0
        %1273 = vmatpush1.bf16.msra.mxu0 0
        %1274 = vmatprep.subr.bf16.mxu0 0
        %1275 = vmatpush1.bf16.msra.mxu0 0
        %1276 = vmatprep.subr.bf16.mxu0 0
        %1277 = vmatpush1.bf16.msra.mxu0 0
        %1278 = vmatprep.subr.bf16.mxu0 0
        %1279 = vmatpush1.bf16.msra.mxu0 0
        %1280 = vmatprep.subr.bf16.mxu0 0
        %1281 = vmatpush1.bf16.msra.mxu0 0
        %1282 = vmatprep.subr.bf16.mxu0 0
        %1283 = vmatpush1.bf16.msra.mxu0 0
        %1284 = vmatprep.mubr.bf16.mxu0 0
        %1285 = vmatmul.mubr.bf16.gmra.mrb[0].mxu0 %v1237
        %v1286 = vpop.f32.mrb[0].mxu0
        %v1287 = vadd.f32 %v1245, %v1286
        %v1288 = vpop.f32.mrb[0].mxu0
        %v1289 = vadd.f32 %v1249, %v1288
        %v1290 = vpop.f32.mrb[0].mxu0
        %v1291 = vadd.f32 %v1245, %v1290
        %v1292 = vpop.f32.mrb[0].mxu0
        %v1293 = vadd.f32 %v1249, %v1292
        %1294 = vmatprep.mubr.bf16.mxu0 0
        %1295 = vmatmul.mubr.bf16.gmra.mrb[0].mxu0 %v1238
        %v1296 = vpop.f32.mrb[0].mxu0
        %v1297 = vadd.f32 %v1245, %v1296
        %v1298 = vpop.f32.mrb[0].mxu0
        %v1299 = vadd.f32 %v1249, %v1298
        %v1300 = vpop.f32.mrb[0].mxu0
        %v1301 = vadd.f32 %v1245, %v1300
        %v1302 = vpop.f32.mrb[0].mxu0
        %v1303 = vadd.f32 %v1249, %v1302
        %1304 = vmatprep.mubr.bf16.mxu0 0
        %1305 = vmatmul.mubr.bf16.gmra.mrb[0].mxu0 %v1239
        %v1306 = vpop.f32.mrb[0].mxu0
        %v1307 = vadd.f32 %v1245, %v1306
        %v1308 = vpop.f32.mrb[0].mxu0
        %v1309 = vadd.f32 %v1249, %v1308
        %v1310 = vpop.f32.mrb[0].mxu0
        %v1311 = vadd.f32 %v1245, %v1310
        %v1312 = vpop.f32.mrb[0].mxu0
        %v1313 = vadd.f32 %v1249, %v1312
        %1314 = vmatprep.mubr.bf16.mxu0 0
        %1315 = vmatmul.mubr.bf16.gmra.mrb[0].mxu0 %v1240
        %v1316 = vpop.f32.mrb[0].mxu0
        %v1317 = vadd.f32 %v1245, %v1316
        %v1318 = vpop.f32.mrb[0].mxu0
        %v1319 = vadd.f32 %v1249, %v1318
        %v1320 = vpop.f32.mrb[0].mxu0
        %v1321 = vadd.f32 %v1245, %v1320
        %v1322 = vpop.f32.mrb[0].mxu0
        %v1323 = vadd.f32 %v1249, %v1322
        %1324 = vdwg.mxu0
        %v1325 = vmul.f32 %v1287, 0.5
        %v1326 = vmul.f32 %v1289, 0.5
        %v1327 = vmul.f32 %v1291, 0.5
        %v1328 = vmul.f32 %v1293, 0.5
        %v1329 = vmul.f32 %v1297, 0.5
        %v1330 = vmul.f32 %v1299, 0.5
        %v1331 = vmul.f32 %v1301, 0.5
        %v1332 = vmul.f32 %v1303, 0.5
        %v1333 = vmul.f32 %v1307, 0.5
        %v1334 = vmul.f32 %v1309, 0.5
        %v1335 = vmul.f32 %v1311, 0.5
        %v1336 = vmul.f32 %v1313, 0.5
        %v1337 = vmul.f32 %v1317, 0.5
        %v1338 = vmul.f32 %v1319, 0.5
        %v1339 = vmul.f32 %v1321, 0.5
        %v1340 = vmul.f32 %v1323, 0.5
        %v1341 = vmul.f32 %v1287, 0.044715
        %v1342 = vmul.f32 %v1289, 0.044715
        %v1343 = vmul.f32 %v1291, 0.044715
        %v1344 = vmul.f32 %v1293, 0.044715
        %v1345 = vmul.f32 %v1297, 0.044715
        %v1346 = vmul.f32 %v1299, 0.044715
        %v1347 = vmul.f32 %v1301, 0.044715
        %v1348 = vmul.f32 %v1303, 0.044715
        %v1349 = vmul.f32 %v1307, 0.044715
        %v1350 = vmul.f32 %v1309, 0.044715
        %v1351 = vmul.f32 %v1311, 0.044715
        %v1352 = vmul.f32 %v1313, 0.044715
        %v1353 = vmul.f32 %v1317, 0.044715
        %v1354 = vmul.f32 %v1319, 0.044715
        %v1355 = vmul.f32 %v1321, 0.044715
        %v1356 = vmul.f32 %v1323, 0.044715
        %v1357 = vmul.f32 %v1341, %v1287
        %v1358 = vmul.f32 %v1342, %v1289
        %v1359 = vmul.f32 %v1343, %v1291
        %v1360 = vmul.f32 %v1344, %v1293
        %v1361 = vmul.f32 %v1345, %v1297
        %v1362 = vmul.f32 %v1346, %v1299
        %v1363 = vmul.f32 %v1347, %v1301
        %v1364 = vmul.f32 %v1348, %v1303
        %v1365 = vmul.f32 %v1349, %v1307
        %v1366 = vmul.f32 %v1350, %v1309
        %v1367 = vmul.f32 %v1351, %v1311
        %v1368 = vmul.f32 %v1352, %v1313
        %v1369 = vmul.f32 %v1353, %v1317
        %v1370 = vmul.f32 %v1354, %v1319
        %v1371 = vmul.f32 %v1355, %v1321
        %v1372 = vmul.f32 %v1356, %v1323
        %v1373 = vmul.f32 %v1357, %v1287
        %v1374 = vmul.f32 %v1358, %v1289
        %v1375 = vmul.f32 %v1359, %v1291
        %v1376 = vmul.f32 %v1360, %v1293
        %v1377 = vmul.f32 %v1361, %v1297
        %v1378 = vmul.f32 %v1362, %v1299
        %v1379 = vmul.f32 %v1363, %v1301
        %v1380 = vmul.f32 %v1364, %v1303
        %v1381 = vmul.f32 %v1365, %v1307
        %v1382 = vmul.f32 %v1366, %v1309
        %v1383 = vmul.f32 %v1367, %v1311
        %v1384 = vmul.f32 %v1368, %v1313
        %v1385 = vmul.f32 %v1369, %v1317
        %v1386 = vmul.f32 %v1370, %v1319
        %v1387 = vmul.f32 %v1371, %v1321
        %v1388 = vmul.f32 %v1372, %v1323
        %v1389 = vadd.f32 %v1287, %v1373
        %v1390 = vadd.f32 %v1289, %v1374
        %v1391 = vadd.f32 %v1291, %v1375
        %v1392 = vadd.f32 %v1293, %v1376
        %v1393 = vadd.f32 %v1297, %v1377
        %v1394 = vadd.f32 %v1299, %v1378
        %v1395 = vadd.f32 %v1301, %v1379
        %v1396 = vadd.f32 %v1303, %v1380
        %v1397 = vadd.f32 %v1307, %v1381
        %v1398 = vadd.f32 %v1309, %v1382
        %v1399 = vadd.f32 %v1311, %v1383
        %v1400 = vadd.f32 %v1313, %v1384
        %v1401 = vadd.f32 %v1317, %v1385
        %v1402 = vadd.f32 %v1319, %v1386
        %v1403 = vadd.f32 %v1321, %v1387
        %v1404 = vadd.f32 %v1323, %v1388
        %v1405 = vmul.f32 %v1389, 0.7978846
        %v1406 = vmul.f32 %v1390, 0.7978846
        %v1407 = vmul.f32 %v1391, 0.7978846
        %v1408 = vmul.f32 %v1392, 0.7978846
        %v1409 = vmul.f32 %v1393, 0.7978846
        %v1410 = vmul.f32 %v1394, 0.7978846
        %v1411 = vmul.f32 %v1395, 0.7978846
        %v1412 = vmul.f32 %v1396, 0.7978846
        %v1413 = vmul.f32 %v1397, 0.7978846
        %v1414 = vmul.f32 %v1398, 0.7978846
        %v1415 = vmul.f32 %v1399, 0.7978846
        %v1416 = vmul.f32 %v1400, 0.7978846
        %v1417 = vmul.f32 %v1401, 0.7978846
        %v1418 = vmul.f32 %v1402, 0.7978846
        %v1419 = vmul.f32 %v1403, 0.7978846
        %v1420 = vmul.f32 %v1404, 0.7978846
        %v1421 = vtanh.pop %v1405
        %v1422 = vtanh.pop %v1406
        %v1423 = vtanh.pop %v1407
        %v1424 = vtanh.pop %v1408
        %v1425 = vtanh.pop %v1409
        %v1426 = vtanh.pop %v1410
        %v1427 = vtanh.pop %v1411
        %v1428 = vtanh.pop %v1412
        %v1429 = vtanh.pop %v1413
        %v1430 = vtanh.pop %v1414
        %v1431 = vtanh.pop %v1415
        %v1432 = vtanh.pop %v1416
        %v1433 = vtanh.pop %v1417
        %v1434 = vtanh.pop %v1418
        %v1435 = vtanh.pop %v1419
        %v1436 = vtanh.pop %v1420
        %v1437 = vadd.f32 %v1421, 1.0
        %v1438 = vadd.f32 %v1422, 1.0
        %v1439 = vadd.f32 %v1423, 1.0
        %v1440 = vadd.f32 %v1424, 1.0
        %v1441 = vadd.f32 %v1425, 1.0
        %v1442 = vadd.f32 %v1426, 1.0
        %v1443 = vadd.f32 %v1427, 1.0
        %v1444 = vadd.f32 %v1428, 1.0
        %v1445 = vadd.f32 %v1429, 1.0
        %v1446 = vadd.f32 %v1430, 1.0
        %v1447 = vadd.f32 %v1431, 1.0
        %v1448 = vadd.f32 %v1432, 1.0
        %v1449 = vadd.f32 %v1433, 1.0
        %v1450 = vadd.f32 %v1434, 1.0
        %v1451 = vadd.f32 %v1435, 1.0
        %v1452 = vadd.f32 %v1436, 1.0
        %v1453 = vmul.f32 %v1325, %v1437
        %v1454 = vmul.f32 %v1326, %v1438
        %v1455 = vmul.f32 %v1327, %v1439
        %v1456 = vmul.f32 %v1328, %v1440
        %v1457 = vmul.f32 %v1329, %v1441
        %v1458 = vmul.f32 %v1330, %v1442
        %v1459 = vmul.f32 %v1331, %v1443
        %v1460 = vmul.f32 %v1332, %v1444
        %v1461 = vmul.f32 %v1333, %v1445
        %v1462 = vmul.f32 %v1334, %v1446
        %v1463 = vmul.f32 %v1335, %v1447
        %v1464 = vmul.f32 %v1336, %v1448
        %v1465 = vmul.f32 %v1337, %v1449
        %v1466 = vmul.f32 %v1338, %v1450
        %v1467 = vmul.f32 %v1339, %v1451
        %v1468 = vmul.f32 %v1340, %v1452
        %v1469 = vpack.c.bf16 %v1455, %v1453
        %v1470 = vpack.c.bf16 %v1456, %v1454
        %v1471 = vpack.c.bf16 %v1459, %v1457
        %v1472 = vpack.c.bf16 %v1460, %v1458
        %v1473 = vpack.c.bf16 %v1463, %v1461
        %v1474 = vpack.c.bf16 %v1464, %v1462
        %v1475 = vpack.c.bf16 %v1467, %v1465
        %v1476 = vpack.c.bf16 %v1468, %v1466
        %v1478 = vlaneseq
        %v1479 = vshrl.u32 %v1478, 7
        %v1480 = vsub.s32 0, %v1479
        %v1481 = vrot.slane %v549, %v1480
        %1483 = vmatprep.subr.bf16.mxu0 0
        %1484 = vmatpush1.bf16.msra.mxu0 %v678
        %1485 = vmatprep.subr.bf16.mxu0 0
        %1486 = vmatpush1.bf16.msra.mxu0 %v679
        %1487 = vmatprep.subr.bf16.mxu0 0
        %1488 = vmatpush1.bf16.msra.mxu0 %v680
        %1489 = vmatprep.subr.bf16.mxu0 0
        %1490 = vmatpush1.bf16.msra.mxu0 %v681
        %1491 = vmatprep.subr.bf16.mxu0 0
        %1492 = vmatpush1.bf16.msra.mxu0 %v682
        %1493 = vmatprep.subr.bf16.mxu0 0
        %1494 = vmatpush1.bf16.msra.mxu0 %v683
        %1495 = vmatprep.subr.bf16.mxu0 0
        %1496 = vmatpush1.bf16.msra.mxu0 %v684
        %1497 = vmatprep.subr.bf16.mxu0 0
        %1498 = vmatpush1.bf16.msra.mxu0 %v685
        %1499 = vmatprep.subr.bf16.mxu0 0
        %1500 = vmatpush1.bf16.msra.mxu0 %v686
        %1501 = vmatprep.subr.bf16.mxu0 0
        %1502 = vmatpush1.bf16.msra.mxu0 %v687
        %1503 = vmatprep.subr.bf16.mxu0 0
        %1504 = vmatpush1.bf16.msra.mxu0 %v688
        %1505 = vmatprep.subr.bf16.mxu0 0
        %1506 = vmatpush1.bf16.msra.mxu0 %v689
        %1507 = vmatprep.subr.bf16.mxu0 0
        %1508 = vmatpush1.bf16.msra.mxu0 %v690
        %1509 = vmatprep.subr.bf16.mxu0 0
        %1510 = vmatpush1.bf16.msra.mxu0 %v691
        %1511 = vmatprep.subr.bf16.mxu0 0
        %1512 = vmatpush1.bf16.msra.mxu0 %v692
        %1513 = vmatprep.subr.bf16.mxu0 0
        %1514 = vmatpush1.bf16.msra.mxu0 %v693
        %1515 = vmatprep.mubr.bf16.mxu0 %v1470
        %1516 = vmatmul.mubr.bf16.gmra.mrb[0].mxu0 %v1469
        %v1517 = vpop.f32.mrb[0].mxu0
        %v1518 = vadd.f32 %v1481, %v1517
        %v1519 = vpop.f32.mrb[0].mxu0
        %v1520 = vpop.f32.mrb[0].mxu0
        %v1521 = vadd.f32 %v1481, %v1520
        %v1522 = vpop.f32.mrb[0].mxu0
        %1523 = vmatprep.mubr.bf16.mxu0 %v1472
        %1524 = vmatmul.mubr.bf16.gmra.mrb[0].mxu0 %v1471
        %v1525 = vpop.f32.mrb[0].mxu0
        %v1526 = vadd.f32 %v1481, %v1525
        %v1527 = vpop.f32.mrb[0].mxu0
        %v1528 = vpop.f32.mrb[0].mxu0
        %v1529 = vadd.f32 %v1481, %v1528
        %v1530 = vpop.f32.mrb[0].mxu0
        %1531 = vmatprep.mubr.bf16.mxu0 %v1474
        %1532 = vmatmul.mubr.bf16.gmra.mrb[0].mxu0 %v1473
        %v1533 = vpop.f32.mrb[0].mxu0
        %v1534 = vadd.f32 %v1481, %v1533
        %v1535 = vpop.f32.mrb[0].mxu0
        %v1536 = vpop.f32.mrb[0].mxu0
        %v1537 = vadd.f32 %v1481, %v1536
        %v1538 = vpop.f32.mrb[0].mxu0
        %1539 = vmatprep.mubr.bf16.mxu0 %v1476
        %1540 = vmatmul.mubr.bf16.gmra.mrb[0].mxu0 %v1475
        %v1541 = vpop.f32.mrb[0].mxu0
        %v1542 = vadd.f32 %v1481, %v1541
        %v1543 = vpop.f32.mrb[0].mxu0
        %v1544 = vpop.f32.mrb[0].mxu0
        %v1545 = vadd.f32 %v1481, %v1544
        %v1546 = vpop.f32.mrb[0].mxu0
        %1547 = vdwg.mxu0
        %v1548 = vadd.f32 %v1518, %v1113
        %v1549 = vadd.f32 %v1521, %v1114
        %v1550 = vadd.f32 %v1526, %v1115
        %v1551 = vadd.f32 %v1529, %v1116
        %v1552 = vadd.f32 %v1534, %v1117
        %v1553 = vadd.f32 %v1537, %v1118
        %v1554 = vadd.f32 %v1542, %v1119
        %v1555 = vadd.f32 %v1545, %v1120
        %1556 = vst [vmem:[%s539] sm:$0xff] %v1548
        %1557 = vst [vmem:[%s539 + $0x8] sm:$0xff] %v1549
        %1558 = vst [vmem:[%s539 + $0x10] sm:$0xff] %v1550
        %1559 = vst [vmem:[%s539 + $0x18] sm:$0xff] %v1551
        %1560 = vst [vmem:[%s539 + $0x20] sm:$0xff] %v1552
        %1561 = vst [vmem:[%s539 + $0x28] sm:$0xff] %v1553
        %1562 = vst [vmem:[%s539 + $0x30] sm:$0xff] %v1554
        %1563 = vst [vmem:[%s539 + $0x38] sm:$0xff] %v1555
        %s1564 = smul.u32 8, %s30
        %p1565 = scmp.lt.s32.totalorder %s1564, 15
        %s1566 = scalar_select %p1565, %s1564, 15
        %s1567 = smul.addr %s1566, 8
        %s1568 = scalar_lea.vmem %s14, %s1567
        // Predicated region
        $region93: #{mamba_block.1} parent=75 // pred_check
          %p1569 = pneg %p347
        $region94: #{mamba_block.1} parent=75 // pred_check_branch
          %1571 = sbr.rel (%p1569) target = $region96
        $region95: #{mamba_block.1} parent=75 // pred_region
          %s1572 = smul.u32 8, %s30
        $region96: #{mamba_block.1} parent=75 // pred_fallthru
          _
        // Predicated region
        $region97: #{mamba_block.1} parent=75 // pred_check
          %p1573 = pneg %p368
        $region98: #{mamba_block.1} parent=75 // pred_check_branch
          %1575 = sbr.rel (%p1573) target = $region100
        $region99: #{mamba_block.1} parent=75 // pred_region
          %s1577 = ssub.s32 128, 128
          %1578 = vsyncadd [#allocation6], %s1577
          %s1580 = sshll.u32 [#allocation10], 4
          %s1581 = int_to_ptr.vmem [resolvable:$true] %s1580
          %1583 = dma.vmem_to_hbm [thread:$0]  %s1581, 128, %s15, [#allocation6]
        $region100: #{mamba_block.1} parent=75 // pred_fallthru
          _
        // Predicated region
        $region101: #{mamba_block.1} parent=75 // pred_check
          %p1584 = pneg %p368
        $region102: #{mamba_block.1} parent=75 // pred_check_branch
          %1586 = sbr.rel (%p1584) target = $region104
        $region103: #{mamba_block.1} parent=75 // pred_region
          %1587 = dma.done [#allocation6], 128
        $region104: #{mamba_block.1} parent=75 // pred_fallthru
          _
      $region76: #{mamba_block.1} parent=5 // pred_fallthru
        _
      %p1588 = scmp.le.s32.totalorder 2, %s25
      // Predicated region
      $region105: #{mamba_block.1} parent=5 // pred_check
        %p1589 = pneg %p1588
      $region106: #{mamba_block.1} parent=5 // pred_check_branch
        %1591 = sbr.rel (%p1589) target = $region108
      $region107: #{mamba_block.1} parent=5 // pred_region
        %s1592 = ssub.s32 %s25, 2
        // Predicated region
        $region109: #{mamba_block.1} parent=107 // pred_check
          %p1593 = pneg %p353
        $region110: #{mamba_block.1} parent=107 // pred_check_branch
          %1595 = sbr.rel (%p1593) target = $region112
        $region111: #{mamba_block.1} parent=107 // pred_region
          %s1596 = smul.u32 8, %s31
          %p1597 = scmp.lt.s32.totalorder %s1596, 15
          %s1598 = scalar_select %p1597, %s1596, 15
          %s1599 = smul.addr %s1598, 8
          %s1600 = scalar_lea.vmem %s14, %s1599
        $region112: #{mamba_block.1} parent=107 // pred_fallthru
          _
      $region108: #{mamba_block.1} parent=5 // pred_fallthru
        _
    $region6: #{mamba_block.1} parent=1 // loop_footer
      %s29 = sadd.s32 1, %s25
    $region7: #{mamba_block.1} parent=1 // loop_footer_branch
      %24 = sbr.rel target = $region3
    $region8: #{mamba_block.1} parent=1 // loop_exit
      _
    %1601 = vsyncpa [#allocation5], 1
    %s1602 = scalar_lea.sflag [#allocation5], 1
    %1603 = vsyncpa %s1602, 1
    %1604 = vsyncpa [#allocation8], 1
    %1605 = vsyncpa [#allocation6], 1
    %s1606 = scalar_lea.sflag [#allocation6], 1
    %1607 = vsyncpa %s1606, 1

</llo_original>
